<compile_context>
chip_gen: v5e
topology: v5e:2x2
jax: 0.10.0
libtpu: 0.0.40
codegen_flags: <defaults>
</compile_context>

<pallas_src>
import functools

import jax
import jax.numpy as jnp
from jax.experimental import pallas as pl
from jax.experimental.pallas import tpu as pltpu

C = 64            # hidden channel count (module default)
PE_N = C // 4     # positional-encoding frequency count (4*PE_N == C)
POOL = 4          # adaptive-pool output side
EPS = 1e-5
SUBLANE = 8       # f32 sublane tile


def _vmem_spec():
    return pl.BlockSpec(memory_space=pltpu.MemorySpace.VMEM)


def _call(kernel, out_shape, *args):
    # Whole problem fits in VMEM at these sizes -> no grid, full-array blocks.
    # TODO(synk): for large inputs add a row-tiled grid ("parallel" axis for v7x's 2 TCs,
    # vmem_limit_bytes sized for 64 MiB VMEM) with a two-phase BatchNorm reduction.
    return pl.pallas_call(
        kernel,
        out_shape=out_shape,
        in_specs=[_vmem_spec() for _ in args],
        out_specs=_vmem_spec(),
    )(*args)


# ----------------------------- Pallas kernels ------------------------------

def conv_bn_relu_pe_kernel(x_ref, w_ref, b_ref, pe_ref, o_ref, *, batch):
    """im2col conv (bf16 MXU matmul, f32 acc) + BatchNorm (single-pass batch stats,
    gamma=1/beta=0) + ReLU + additive positional encoding broadcast over batch."""
    z = jnp.dot(x_ref[...], w_ref[...], preferred_element_type=jnp.float32) + b_ref[...]
    inv_n = 1.0 / z.shape[0]
    mean = jnp.sum(z, axis=0, keepdims=True) * inv_n                      # one pass:
    var = jnp.maximum(jnp.sum(z * z, axis=0, keepdims=True) * inv_n       # E[x^2]-E[x]^2
                      - mean * mean, 0.0)
    y = jnp.maximum((z - mean) * jax.lax.rsqrt(var + EPS), 0.0)
    # pe is (H*W, C): broadcast across batch in-register instead of DMA-ing a tiled copy.
    hw = pe_ref.shape[0]
    y3 = y.reshape(batch, hw, y.shape[1])
    o_ref[...] = (y3 + pe_ref[...][None, :, :]).astype(o_ref.dtype)


def conv_bn_relu_pool_mlp_kernel(x_ref, w_ref, b_ref, p_ref, w1_ref, b1_ref,
                                 w2_ref, b2_ref, o_ref, *, batch, bp, n_pool):
    """Fused: strided conv (bf16 MXU matmul) + BatchNorm + ReLU + adaptive avg-pool
    (one block-structured matmul over all batches) + Linear/ReLU/Linear head."""
    z = jnp.dot(x_ref[...], w_ref[...], preferred_element_type=jnp.float32) + b_ref[...]
    inv_n = 1.0 / z.shape[0]
    mean = jnp.sum(z, axis=0, keepdims=True) * inv_n
    var = jnp.maximum(jnp.sum(z * z, axis=0, keepdims=True) * inv_n - mean * mean, 0.0)
    y = jnp.maximum((z - mean) * jax.lax.rsqrt(var + EPS), 0.0)

    # pooled[p*bp + b, c] = average of pool-bin p of batch b (rows b >= batch are zero pad,
    # so every later slice is sublane-aligned).  Standard (non-transposed) contraction.
    pooled = jnp.dot(p_ref[...], y, preferred_element_type=jnp.float32)   # (n_pool*bp, C)

    # Lane-dense flatten to (batch, n_pool*C): aligned row slices + lane-dim concat.
    # Column order is p-major; the fc1 weight rows were permuted to match in the wrapper.
    flat = jnp.concatenate(
        [pooled[p * bp:(p + 1) * bp, :] for p in range(n_pool)], axis=1)[:batch, :]

    h = jnp.dot(flat.astype(w1_ref.dtype), w1_ref[...],
                preferred_element_type=jnp.float32) + b1_ref[...]
    h = jnp.maximum(h, 0.0)
    o_ref[...] = jnp.dot(h, w2_ref[...], preferred_element_type=jnp.float32) + b2_ref[...]


# ------------------------------- JAX glue ----------------------------------

def im2col(x, k, stride, pad):
    """x: (B, H, W, C) -> patches (B*Ho*Wo, k*k*C), row order (b, ho, wo)."""
    # TODO(synk): for large inputs replace im2col (9x feature bytes in HBM) with
    # in-kernel shifted matmuls that read the feature map once.
    B, H, W, Cc = x.shape
    xp = jnp.pad(x, ((0, 0), (pad, pad), (pad, pad), (0, 0)))
    Ho = (H + 2 * pad - k) // stride + 1
    Wo = (W + 2 * pad - k) // stride + 1
    cols = []
    for di in range(k):
        for dj in range(k):
            cols.append(xp[:, di:di + stride * Ho:stride, dj:dj + stride * Wo:stride, :])
    p = jnp.stack(cols, axis=3)                                   # (B, Ho, Wo, k*k, C)
    return p.reshape(B * Ho * Wo, k * k * Cc), Ho, Wo


def positional_encoding(H, W, n_freq):
    # TODO(synk): inrnet PositionalEncoding acts on continuous INR coords; here it is
    # an additive sinusoidal encoding of the discrete sample grid (4*N == C channels).
    ys = jnp.linspace(-1.0, 1.0, H)
    xs = jnp.linspace(-1.0, 1.0, W)
    yy, xx = jnp.meshgrid(ys, xs, indexing="ij")
    coords = jnp.stack([yy, xx], axis=-1).reshape(H * W, 2)
    freqs = (2.0 ** jnp.arange(n_freq, dtype=jnp.float32)) * jnp.pi
    ang = coords[:, :, None] * freqs[None, None, :]               # (HW, 2, N)
    pe = jnp.concatenate([jnp.sin(ang), jnp.cos(ang)], axis=-1)   # (HW, 2, 2N)
    return pe.reshape(H * W, 4 * n_freq).astype(jnp.float32)      # (HW, 4N == C)


def pool_matrix_pb(batch, bp, h_in, w_in, h_out, w_out):
    """(h_out*w_out*bp, batch*h_in*w_in) matrix whose row p*bp+b averages pool-bin p of
    batch b; rows with b >= batch are zero padding so kernel slices stay sublane-aligned."""
    assert h_in % h_out == 0 and w_in % w_out == 0, "adaptive pool needs divisible sizes"
    rh, rw = h_in // h_out, w_in // w_out
    hh, ww = jnp.meshgrid(jnp.arange(h_in), jnp.arange(w_in), indexing="ij")
    bins = ((hh // rh) * w_out + (ww // rw)).reshape(-1)                  # (S,)
    p_small = (jnp.arange(h_out * w_out)[:, None] == bins[None, :])
    p_small = p_small.astype(jnp.float32) / float(rh * rw)                # (P, S)
    sel = jnp.eye(bp, batch, dtype=jnp.float32)                           # (bp, B)
    pb = jnp.einsum("ps,bc->pbcs", p_small, sel)                          # (P, bp, B, S)
    return pb.reshape(h_out * w_out * bp, batch * h_in * w_in)


def kaiming_uniform(key, shape, fan_in):
    bound = (6.0 / fan_in) ** 0.5
    return jax.random.uniform(key, shape, jnp.float32, -bound, bound)


def init_params(key, in_channels, out_dims, hidden=128):
    k1, k2, k3, k4 = jax.random.split(key, 4)
    return {
        "w_conv1": kaiming_uniform(k1, (3 * 3 * in_channels, C), 3 * 3 * in_channels),
        "b_conv1": jnp.zeros((1, C), jnp.float32),
        "w_conv2": kaiming_uniform(k2, (3 * 3 * C, C), 3 * 3 * C),
        "b_conv2": jnp.zeros((1, C), jnp.float32),
        # stored PyTorch-style: row index = c*16 + (oh*4 + ow)  (NCHW flatten of (C,4,4))
        "w_fc1":   kaiming_uniform(k3, (C * POOL * POOL, hidden), C * POOL * POOL),
        "b_fc1":   jnp.zeros((1, hidden), jnp.float32),
        "w_fc2":   kaiming_uniform(k4, (hidden, out_dims), hidden),
        "b_fc2":   jnp.zeros((1, out_dims), jnp.float32),
    }


def aap_cls2_forward(params, x_nchw):
    x = jnp.transpose(x_nchw, (0, 2, 3, 1)).astype(jnp.float32)   # NCHW -> NHWC
    B = x.shape[0]
    bp = max(SUBLANE, ((B + SUBLANE - 1) // SUBLANE) * SUBLANE)   # batch padded to sublane tile

    # --- block 1: conv_norm_act(in_channels -> C) + PositionalEncoding --------------
    # TODO(synk): continuous kernel_size=(0.05,0.05)/(0.2,0.2) on the INR are discretized
    # to 3x3 convolutions (stride 1 / stride 2) on the sample grid.
    patches1, H1, W1 = im2col(x, k=3, stride=1, pad=1)
    pe = positional_encoding(H1, W1, PE_N)                        # (H1*W1, C), passed once
    feat1 = _call(
        functools.partial(conv_bn_relu_pe_kernel, batch=B),
        jax.ShapeDtypeStruct((B, H1 * W1, C), jnp.bfloat16),
        patches1.astype(jnp.bfloat16),
        params["w_conv1"].astype(jnp.bfloat16),
        params["b_conv1"],
        pe)

    # --- block 2 (one fused kernel): conv_norm_act(C->C, stride 2) + BN + ReLU +
    #     AdaptiveAvgPool((4,4)) + Linear(C*16 -> 128) + ReLU + Linear(128 -> out) -----
    patches2, H2, W2 = im2col(feat1.reshape(B, H1, W1, C), k=3, stride=2, pad=1)
    p_pb = pool_matrix_pb(B, bp, H2, W2, POOL, POOL)

    hidden = params["w_fc1"].shape[1]
    out_dims = params["w_fc2"].shape[1]
    # permute fc1 rows from PyTorch's NCHW-flatten order (c*16 + p) to the kernel's
    # p-major order (p*C + c) so the in-kernel flatten needs no channel-major transpose.
    w1r = (params["w_fc1"].reshape(C, POOL * POOL, hidden)
           .transpose(1, 0, 2).reshape(POOL * POOL * C, hidden))

    return _call(
        functools.partial(conv_bn_relu_pool_mlp_kernel,
                          batch=B, bp=bp, n_pool=POOL * POOL),
        jax.ShapeDtypeStruct((B, out_dims), jnp.float32),
        patches2,                                   # already bf16 (from feat1)
        params["w_conv2"].astype(jnp.bfloat16),
        params["b_conv2"],
        p_pb,
        w1r.astype(jnp.bfloat16),
        params["b_fc1"],
        params["w_fc2"],
        params["b_fc2"])


if __name__ == "__main__":
    key = jax.random.PRNGKey(0)
    kp, kx = jax.random.split(key)

    in_channels, out_dims = 4, 10
    params = init_params(kp, in_channels, out_dims)
    x = jax.random.normal(kx, (2, in_channels, 16, 16), jnp.float32)

    out = jax.jit(aap_cls2_forward)(params, x)
    jax.block_until_ready(out)
    assert out.shape == (2, out_dims), out.shape
    print("KERNEL_OK")
</pallas_src>

<mosaic_0001>
module attributes {stable_mosaic.version = 11 : i64} {
  func.func @conv_bn_relu_pe_kernel(%arg0: memref<512x36xbf16, #tpu.memory_space<vmem>>, %arg1: memref<36x64xbf16, #tpu.memory_space<vmem>>, %arg2: memref<1x64xf32, #tpu.memory_space<vmem>>, %arg3: memref<256x64xf32, #tpu.memory_space<vmem>>, %arg4: memref<2x256x64xbf16, #tpu.memory_space<vmem>>) attributes {dimension_semantics = [], scalar_prefetch = 0 : i64, scratch_operands = 0 : i64, tpu.core_type = #tpu.core_type<tc>} {
    %c0 = arith.constant 0 : index
    %c0_0 = arith.constant 0 : index
    %0 = vector.load %arg0[%c0, %c0_0] : memref<512x36xbf16, #tpu.memory_space<vmem>>, vector<512x36xbf16>
    %c0_1 = arith.constant 0 : index
    %c0_2 = arith.constant 0 : index
    %1 = vector.load %arg1[%c0_1, %c0_2] : memref<36x64xbf16, #tpu.memory_space<vmem>>, vector<36x64xbf16>
    %cst = arith.constant dense<0.000000e+00> : vector<512x64xf32>
    %2 = tpu.matmul %0, %1, %cst {dimension_numbers = #tpu.dot_dimension_numbers<[1], [0], [0], [1], [0, 0, 1, 1], [], []>} : vector<512x36xbf16>, vector<36x64xbf16>, vector<512x64xf32> -> vector<512x64xf32>
    %c0_3 = arith.constant 0 : index
    %c0_4 = arith.constant 0 : index
    %3 = vector.load %arg2[%c0_3, %c0_4] : memref<1x64xf32, #tpu.memory_space<vmem>>, vector<1x64xf32>
    %4 = vector.broadcast %3 : vector<1x64xf32> to vector<512x64xf32>
    %5 = arith.addf %2, %4 : vector<512x64xf32>
    %cst_5 = arith.constant dense<0.000000e+00> : vector<64xf32>
    %6 = vector.multi_reduction <add>, %5, %cst_5 [0] : vector<512x64xf32> to vector<64xf32>
    %7 = vector.shape_cast %6 : vector<64xf32> to vector<1x64xf32>
    %cst_6 = arith.constant 0.001953125 : f32
    %8 = vector.broadcast %cst_6 : f32 to vector<1x64xf32>
    %9 = arith.mulf %7, %8 : vector<1x64xf32>
    %10 = arith.mulf %5, %5 : vector<512x64xf32>
    %cst_7 = arith.constant dense<0.000000e+00> : vector<64xf32>
    %11 = vector.multi_reduction <add>, %10, %cst_7 [0] : vector<512x64xf32> to vector<64xf32>
    %12 = vector.shape_cast %11 : vector<64xf32> to vector<1x64xf32>
    %cst_8 = arith.constant 0.001953125 : f32
    %13 = vector.broadcast %cst_8 : f32 to vector<1x64xf32>
    %14 = arith.mulf %12, %13 : vector<1x64xf32>
    %15 = arith.mulf %9, %9 : vector<1x64xf32>
    %16 = arith.subf %14, %15 : vector<1x64xf32>
    %cst_9 = arith.constant 0.000000e+00 : f32
    %17 = vector.broadcast %cst_9 : f32 to vector<1x64xf32>
    %18 = arith.maximumf %16, %17 : vector<1x64xf32>
    %19 = vector.broadcast %9 : vector<1x64xf32> to vector<512x64xf32>
    %20 = arith.subf %5, %19 : vector<512x64xf32>
    %cst_10 = arith.constant 9.99999974E-6 : f32
    %21 = vector.broadcast %cst_10 : f32 to vector<1x64xf32>
    %22 = arith.addf %18, %21 : vector<1x64xf32>
    %23 = math.rsqrt %22 : vector<1x64xf32>
    %24 = vector.broadcast %23 : vector<1x64xf32> to vector<512x64xf32>
    %25 = arith.mulf %20, %24 : vector<512x64xf32>
    %cst_11 = arith.constant 0.000000e+00 : f32
    %26 = vector.broadcast %cst_11 : f32 to vector<512x64xf32>
    %27 = arith.maximumf %25, %26 : vector<512x64xf32>
    %28 = vector.shape_cast %27 : vector<512x64xf32> to vector<2x256x64xf32>
    %c0_12 = arith.constant 0 : index
    %c0_13 = arith.constant 0 : index
    %29 = vector.load %arg3[%c0_12, %c0_13] : memref<256x64xf32, #tpu.memory_space<vmem>>, vector<256x64xf32>
    %30 = vector.shape_cast %29 : vector<256x64xf32> to vector<1x256x64xf32>
    %31 = vector.broadcast %30 : vector<1x256x64xf32> to vector<2x256x64xf32>
    %32 = arith.addf %28, %31 : vector<2x256x64xf32>
    %33 = arith.truncf %32 : vector<2x256x64xf32> to vector<2x256x64xbf16>
    %c0_14 = arith.constant 0 : index
    %c0_15 = arith.constant 0 : index
    %c0_16 = arith.constant 0 : index
    %34 = vector.load %arg4[%c0_14, %c0_15, %c0_16] : memref<2x256x64xbf16, #tpu.memory_space<vmem>>, vector<2x256x64xbf16>
    tpu.vector_store %arg4[%c0_14, %c0_15, %c0_16], %33 {strides = array<i32>} : memref<2x256x64xbf16, #tpu.memory_space<vmem>>, vector<2x256x64xbf16>,
    return
  }
}

module attributes {stable_mosaic.version = 11 : i64} {
  func.func @conv_bn_relu_pool_mlp_kernel(%arg0: memref<128x576xbf16, #tpu.memory_space<vmem>>, %arg1: memref<576x64xbf16, #tpu.memory_space<vmem>>, %arg2: memref<1x64xf32, #tpu.memory_space<vmem>>, %arg3: memref<128x128xf32, #tpu.memory_space<vmem>>, %arg4: memref<1024x128xbf16, #tpu.memory_space<vmem>>, %arg5: memref<1x128xf32, #tpu.memory_space<vmem>>, %arg6: memref<128x10xf32, #tpu.memory_space<vmem>>, %arg7: memref<1x10xf32, #tpu.memory_space<vmem>>, %arg8: memref<2x10xf32, #tpu.memory_space<vmem>>) attributes {dimension_semantics = [], scalar_prefetch = 0 : i64, scratch_operands = 0 : i64, tpu.core_type = #tpu.core_type<tc>} {
    %c0 = arith.constant 0 : index
    %c0_0 = arith.constant 0 : index
    %0 = vector.load %arg0[%c0, %c0_0] : memref<128x576xbf16, #tpu.memory_space<vmem>>, vector<128x576xbf16>
    %c0_1 = arith.constant 0 : index
    %c0_2 = arith.constant 0 : index
    %1 = vector.load %arg1[%c0_1, %c0_2] : memref<576x64xbf16, #tpu.memory_space<vmem>>, vector<576x64xbf16>
    %cst = arith.constant dense<0.000000e+00> : vector<128x64xf32>
    %2 = tpu.matmul %0, %1, %cst {dimension_numbers = #tpu.dot_dimension_numbers<[1], [0], [0], [1], [0, 0, 1, 1], [], []>} : vector<128x576xbf16>, vector<576x64xbf16>, vector<128x64xf32> -> vector<128x64xf32>
    %c0_3 = arith.constant 0 : index
    %c0_4 = arith.constant 0 : index
    %3 = vector.load %arg2[%c0_3, %c0_4] : memref<1x64xf32, #tpu.memory_space<vmem>>, vector<1x64xf32>
    %4 = vector.broadcast %3 : vector<1x64xf32> to vector<128x64xf32>
    %5 = arith.addf %2, %4 : vector<128x64xf32>
    %cst_5 = arith.constant dense<0.000000e+00> : vector<64xf32>
    %6 = vector.multi_reduction <add>, %5, %cst_5 [0] : vector<128x64xf32> to vector<64xf32>
    %7 = vector.shape_cast %6 : vector<64xf32> to vector<1x64xf32>
    %cst_6 = arith.constant 7.812500e-03 : f32
    %8 = vector.broadcast %cst_6 : f32 to vector<1x64xf32>
    %9 = arith.mulf %7, %8 : vector<1x64xf32>
    %10 = arith.mulf %5, %5 : vector<128x64xf32>
    %cst_7 = arith.constant dense<0.000000e+00> : vector<64xf32>
    %11 = vector.multi_reduction <add>, %10, %cst_7 [0] : vector<128x64xf32> to vector<64xf32>
    %12 = vector.shape_cast %11 : vector<64xf32> to vector<1x64xf32>
    %cst_8 = arith.constant 7.812500e-03 : f32
    %13 = vector.broadcast %cst_8 : f32 to vector<1x64xf32>
    %14 = arith.mulf %12, %13 : vector<1x64xf32>
    %15 = arith.mulf %9, %9 : vector<1x64xf32>
    %16 = arith.subf %14, %15 : vector<1x64xf32>
    %cst_9 = arith.constant 0.000000e+00 : f32
    %17 = vector.broadcast %cst_9 : f32 to vector<1x64xf32>
    %18 = arith.maximumf %16, %17 : vector<1x64xf32>
    %19 = vector.broadcast %9 : vector<1x64xf32> to vector<128x64xf32>
    %20 = arith.subf %5, %19 : vector<128x64xf32>
    %cst_10 = arith.constant 9.99999974E-6 : f32
    %21 = vector.broadcast %cst_10 : f32 to vector<1x64xf32>
    %22 = arith.addf %18, %21 : vector<1x64xf32>
    %23 = math.rsqrt %22 : vector<1x64xf32>
    %24 = vector.broadcast %23 : vector<1x64xf32> to vector<128x64xf32>
    %25 = arith.mulf %20, %24 : vector<128x64xf32>
    %cst_11 = arith.constant 0.000000e+00 : f32
    %26 = vector.broadcast %cst_11 : f32 to vector<128x64xf32>
    %27 = arith.maximumf %25, %26 : vector<128x64xf32>
    %c0_12 = arith.constant 0 : index
    %c0_13 = arith.constant 0 : index
    %28 = vector.load %arg3[%c0_12, %c0_13] : memref<128x128xf32, #tpu.memory_space<vmem>>, vector<128x128xf32>
    %cst_14 = arith.constant dense<0.000000e+00> : vector<128x64xf32>
    %29 = tpu.matmul %28, %27, %cst_14 {dimension_numbers = #tpu.dot_dimension_numbers<[1], [0], [0], [1], [0, 0, 1, 1], [], []>} : vector<128x128xf32>, vector<128x64xf32>, vector<128x64xf32> -> vector<128x64xf32>
    %30 = vector.extract_strided_slice %29 {offsets = [0, 0], sizes = [8, 64], strides = [1, 1]} : vector<128x64xf32> to vector<8x64xf32>
    %31 = vector.extract_strided_slice %29 {offsets = [8, 0], sizes = [8, 64], strides = [1, 1]} : vector<128x64xf32> to vector<8x64xf32>
    %32 = vector.extract_strided_slice %29 {offsets = [16, 0], sizes = [8, 64], strides = [1, 1]} : vector<128x64xf32> to vector<8x64xf32>
    %33 = vector.extract_strided_slice %29 {offsets = [24, 0], sizes = [8, 64], strides = [1, 1]} : vector<128x64xf32> to vector<8x64xf32>
    %34 = vector.extract_strided_slice %29 {offsets = [32, 0], sizes = [8, 64], strides = [1, 1]} : vector<128x64xf32> to vector<8x64xf32>
    %35 = vector.extract_strided_slice %29 {offsets = [40, 0], sizes = [8, 64], strides = [1, 1]} : vector<128x64xf32> to vector<8x64xf32>
    %36 = vector.extract_strided_slice %29 {offsets = [48, 0], sizes = [8, 64], strides = [1, 1]} : vector<128x64xf32> to vector<8x64xf32>
    %37 = vector.extract_strided_slice %29 {offsets = [56, 0], sizes = [8, 64], strides = [1, 1]} : vector<128x64xf32> to vector<8x64xf32>
    %38 = vector.extract_strided_slice %29 {offsets = [64, 0], sizes = [8, 64], strides = [1, 1]} : vector<128x64xf32> to vector<8x64xf32>
    %39 = vector.extract_strided_slice %29 {offsets = [72, 0], sizes = [8, 64], strides = [1, 1]} : vector<128x64xf32> to vector<8x64xf32>
    %40 = vector.extract_strided_slice %29 {offsets = [80, 0], sizes = [8, 64], strides = [1, 1]} : vector<128x64xf32> to vector<8x64xf32>
    %41 = vector.extract_strided_slice %29 {offsets = [88, 0], sizes = [8, 64], strides = [1, 1]} : vector<128x64xf32> to vector<8x64xf32>
    %42 = vector.extract_strided_slice %29 {offsets = [96, 0], sizes = [8, 64], strides = [1, 1]} : vector<128x64xf32> to vector<8x64xf32>
    %43 = vector.extract_strided_slice %29 {offsets = [104, 0], sizes = [8, 64], strides = [1, 1]} : vector<128x64xf32> to vector<8x64xf32>
    %44 = vector.extract_strided_slice %29 {offsets = [112, 0], sizes = [8, 64], strides = [1, 1]} : vector<128x64xf32> to vector<8x64xf32>
    %45 = vector.extract_strided_slice %29 {offsets = [120, 0], sizes = [8, 64], strides = [1, 1]} : vector<128x64xf32> to vector<8x64xf32>
    %46 = tpu.concatenate %30, %31, %32, %33, %34, %35, %36, %37, %38, %39, %40, %41, %42, %43, %44, %45 in 1 : vector<8x64xf32>, vector<8x64xf32>, vector<8x64xf32>, vector<8x64xf32>, vector<8x64xf32>, vector<8x64xf32>, vector<8x64xf32>, vector<8x64xf32>, vector<8x64xf32>, vector<8x64xf32>, vector<8x64xf32>, vector<8x64xf32>, vector<8x64xf32>, vector<8x64xf32>, vector<8x64xf32>, vector<8x64xf32> -> vector<8x1024xf32>
    %47 = vector.extract_strided_slice %46 {offsets = [0, 0], sizes = [2, 1024], strides = [1, 1]} : vector<8x1024xf32> to vector<2x1024xf32>
    %48 = arith.truncf %47 : vector<2x1024xf32> to vector<2x1024xbf16>
    %c0_15 = arith.constant 0 : index
    %c0_16 = arith.constant 0 : index
    %49 = vector.load %arg4[%c0_15, %c0_16] : memref<1024x128xbf16, #tpu.memory_space<vmem>>, vector<1024x128xbf16>
    %cst_17 = arith.constant dense<0.000000e+00> : vector<2x128xf32>
    %50 = tpu.matmul %48, %49, %cst_17 {dimension_numbers = #tpu.dot_dimension_numbers<[1], [0], [0], [1], [0, 0, 1, 1], [], []>} : vector<2x1024xbf16>, vector<1024x128xbf16>, vector<2x128xf32> -> vector<2x128xf32>
    %c0_18 = arith.constant 0 : index
    %c0_19 = arith.constant 0 : index
    %51 = vector.load %arg5[%c0_18, %c0_19] : memref<1x128xf32, #tpu.memory_space<vmem>>, vector<1x128xf32>
    %52 = vector.broadcast %51 : vector<1x128xf32> to vector<2x128xf32>
    %53 = arith.addf %50, %52 : vector<2x128xf32>
    %cst_20 = arith.constant 0.000000e+00 : f32
    %54 = vector.broadcast %cst_20 : f32 to vector<2x128xf32>
    %55 = arith.maximumf %53, %54 : vector<2x128xf32>
    %c0_21 = arith.constant 0 : index
    %c0_22 = arith.constant 0 : index
    %56 = vector.load %arg6[%c0_21, %c0_22] : memref<128x10xf32, #tpu.memory_space<vmem>>, vector<128x10xf32>
    %cst_23 = arith.constant dense<0.000000e+00> : vector<2x10xf32>
    %57 = tpu.matmul %55, %56, %cst_23 {dimension_numbers = #tpu.dot_dimension_numbers<[1], [0], [0], [1], [0, 0, 1, 1], [], []>} : vector<2x128xf32>, vector<128x10xf32>, vector<2x10xf32> -> vector<2x10xf32>
    %c0_24 = arith.constant 0 : index
    %c0_25 = arith.constant 0 : index
    %58 = vector.load %arg7[%c0_24, %c0_25] : memref<1x10xf32, #tpu.memory_space<vmem>>, vector<1x10xf32>
    %59 = vector.broadcast %58 : vector<1x10xf32> to vector<2x10xf32>
    %60 = arith.addf %57, %59 : vector<2x10xf32>
    %c0_26 = arith.constant 0 : index
    %c0_27 = arith.constant 0 : index
    %61 = vector.load %arg8[%c0_26, %c0_27] : memref<2x10xf32, #tpu.memory_space<vmem>>, vector<2x10xf32>
    tpu.vector_store %arg8[%c0_26, %c0_27], %60 {strides = array<i32>} : memref<2x10xf32, #tpu.memory_space<vmem>>, vector<2x10xf32>,
    return
  }
}

</mosaic_0001>

<llo_original>
// kernel: mul.29
$region0: #{mul.29}
  %s0 = inlined_call_operand.vmem [shape: f32[16,16,2], index: 0, kind: input, shape index: {}]
  %s1 = inlined_call_operand.vmem [shape: f32[256,2], index: 1, kind: output, shape index: {}]
  $region1: #{mul.29} parent=0
    #allocation0 [shape = 'u8[8192]{0}', space=vmem, size = 0x2000, scoped, tag = 'scoped mem for output reshape']
    %v2 = vld [vmem:[%s0] ss:$8 sm:$0xf]
    %vm3 = vcmask 130048
    %4 = vst.msk [vmem:[#allocation0] ss:$8 sm:$0x3] %vm3, %v2
    %s5 = scalar_lea.vmem [#allocation0], 4294967281
    %6 = vst.msk [vmem:[%s5] ss:$8 sm:$0xc] %vm3, %v2
    %s7 = scalar_lea.vmem %s0, 7
    %s8 = smov 3
    %v9 = vld [vmem:[%s7] ss:$16 sm:%s8]
    %s10 = scalar_lea.vmem %s0, 4294967279
    %s11 = smov 12
    %v12 = vld [vmem:[%s10] ss:$16 sm:%s11]
    %vm13 = vcmask 1043458
    %v14 = vsel %vm13, %v12, %v9
    %15 = vrot.lane.b32.xlu0 %v14, 112
    %v16 = vpop.permute.xlu0 %15
    %vm17 = vcmask 1048448
    %18 = vst.msk [vmem:[#allocation0] sm:$0x3] %vm17, %v16
    %s19 = scalar_lea.vmem [#allocation0], 6
    %20 = vst.msk [vmem:[%s19] sm:$0xc] %vm17, %v16
    %s21 = scalar_lea.vmem %s0, 6
    %s22 = smov 3
    %v23 = vld [vmem:[%s21] ss:$16 sm:%s22]
    %s24 = scalar_lea.vmem %s0, 4294967278
    %s25 = smov 12
    %v26 = vld [vmem:[%s24] ss:$16 sm:%s25]
    %vm27 = vcmask 1043458
    %v28 = vsel %vm27, %v26, %v23
    %29 = vrot.lane.b32.xlu0 %v28, 96
    %v30 = vpop.permute.xlu0 %29
    %vm31 = vcmask 917248
    %32 = vst.msk [vmem:[#allocation0] sm:$0x3] %vm31, %v30
    %s33 = scalar_lea.vmem [#allocation0], 6
    %34 = vst.msk [vmem:[%s33] sm:$0xc] %vm31, %v30
    %s35 = scalar_lea.vmem %s0, 5
    %s36 = smov 3
    %v37 = vld [vmem:[%s35] ss:$16 sm:%s36]
    %s38 = scalar_lea.vmem %s0, 4294967277
    %s39 = smov 12
    %v40 = vld [vmem:[%s38] ss:$16 sm:%s39]
    %vm41 = vcmask 1043458
    %v42 = vsel %vm41, %v40, %v37
    %43 = vrot.lane.b32.xlu0 %v42, 80
    %v44 = vpop.permute.xlu0 %43
    %vm45 = vcmask 786048
    %46 = vst.msk [vmem:[#allocation0] sm:$0x3] %vm45, %v44
    %s47 = scalar_lea.vmem [#allocation0], 6
    %48 = vst.msk [vmem:[%s47] sm:$0xc] %vm45, %v44
    %s49 = scalar_lea.vmem %s0, 4
    %s50 = smov 3
    %v51 = vld [vmem:[%s49] ss:$16 sm:%s50]
    %s52 = scalar_lea.vmem %s0, 4294967276
    %s53 = smov 12
    %v54 = vld [vmem:[%s52] ss:$16 sm:%s53]
    %vm55 = vcmask 1043458
    %v56 = vsel %vm55, %v54, %v51
    %57 = vrot.lane.b32.xlu0 %v56, 64
    %v58 = vpop.permute.xlu0 %57
    %vm59 = vcmask 654848
    %60 = vst.msk [vmem:[#allocation0] sm:$0x3] %vm59, %v58
    %s61 = scalar_lea.vmem [#allocation0], 6
    %62 = vst.msk [vmem:[%s61] sm:$0xc] %vm59, %v58
    %s63 = scalar_lea.vmem %s0, 3
    %s64 = smov 3
    %v65 = vld [vmem:[%s63] ss:$16 sm:%s64]
    %s66 = scalar_lea.vmem %s0, 4294967275
    %s67 = smov 12
    %v68 = vld [vmem:[%s66] ss:$16 sm:%s67]
    %vm69 = vcmask 1043458
    %v70 = vsel %vm69, %v68, %v65
    %71 = vrot.lane.b32.xlu0 %v70, 48
    %v72 = vpop.permute.xlu0 %71
    %vm73 = vcmask 523648
    %74 = vst.msk [vmem:[#allocation0] sm:$0x3] %vm73, %v72
    %s75 = scalar_lea.vmem [#allocation0], 6
    %76 = vst.msk [vmem:[%s75] sm:$0xc] %vm73, %v72
    %s77 = scalar_lea.vmem %s0, 2
    %s78 = smov 3
    %v79 = vld [vmem:[%s77] ss:$16 sm:%s78]
    %s80 = scalar_lea.vmem %s0, 4294967274
    %s81 = smov 12
    %v82 = vld [vmem:[%s80] ss:$16 sm:%s81]
    %vm83 = vcmask 1043458
    %v84 = vsel %vm83, %v82, %v79
    %85 = vrot.lane.b32.xlu0 %v84, 32
    %v86 = vpop.permute.xlu0 %85
    %vm87 = vcmask 392448
    %88 = vst.msk [vmem:[#allocation0] sm:$0x3] %vm87, %v86
    %s89 = scalar_lea.vmem [#allocation0], 6
    %90 = vst.msk [vmem:[%s89] sm:$0xc] %vm87, %v86
    %s91 = scalar_lea.vmem %s0, 1
    %s92 = smov 3
    %v93 = vld [vmem:[%s91] ss:$16 sm:%s92]
    %s94 = scalar_lea.vmem %s0, 4294967273
    %s95 = smov 12
    %v96 = vld [vmem:[%s94] ss:$16 sm:%s95]
    %vm97 = vcmask 1043458
    %v98 = vsel %vm97, %v96, %v93
    %99 = vrot.lane.b32.xlu0 %v98, 16
    %v100 = vpop.permute.xlu0 %99
    %vm101 = vcmask 261248
    %102 = vst.msk [vmem:[#allocation0] sm:$0x3] %vm101, %v100
    %s103 = scalar_lea.vmem [#allocation0], 6
    %104 = vst.msk [vmem:[%s103] sm:$0xc] %vm101, %v100
    %s106 = ssub.s32 4, 1
    %v107 = vld [vmem:[#allocation0] sm:%s106]
    %s109 = ssub.s32 4, 1
    %110 = vst [vmem:[%s1] sm:%s109] %v107
    %s111 = scalar_lea.vmem [#allocation0], 8
    %v112 = vld [vmem:[%s111] sm:%s106]
    %s114 = ssub.s32 4, 1
    %s115 = scalar_lea.vmem %s1, 2
    %116 = vst [vmem:[%s115] sm:%s114] %v112

// kernel: aap_cls2_forward.2
$region0: #{aap_cls2_forward.2}
  #allocation0 [shape = 'u32[]', space=smem, size = 0x4, offset = 0x4, fixed_abs, tag = 'smem constant byte address 0x4 - core index']
  #allocation1 [shape = 'u32[72,128]{1,0:T(1,128)}', space=vmem, size = 0x9000, scoped, tag = 'internal scratch']
  %s0 = inlined_call_operand.vmem [shape: bf16[512,36], index: 0, kind: input, shape index: {}]
  %s1 = inlined_call_operand.vmem [shape: bf16[36,64], index: 1, kind: input, shape index: {}]
  %s2 = inlined_call_operand.vmem [shape: f32[1,64], index: 2, kind: input, shape index: {}]
  %s3 = inlined_call_operand.vmem [shape: f32[256,64], index: 3, kind: input, shape index: {}]
  %s4 = inlined_call_operand.vmem [shape: bf16[2,256,64], index: 4, kind: output, shape index: {}]
  %s5 = sld [smem:[#allocation0]]
  $region26: #{aap_cls2_forward.2} parent=0
    _
  %s7 = ssub.s32 1, %s5
  %s8 = scalar_select 0, %s7, %s5
  // Predicated region
  $region2: #{aap_cls2_forward.2} parent=0 // pred_check
    _
  $region3: #{aap_cls2_forward.2} parent=0 // pred_check_branch
    %10 = sbr.rel (0) target = $region5
  $region4: #{aap_cls2_forward.2} parent=0 // pred_region
    _
  $region5: #{aap_cls2_forward.2} parent=0 // pred_fallthru
    _
  // Predicated region
  $region6: #{aap_cls2_forward.2} parent=0 // pred_check
    _
  $region7: #{aap_cls2_forward.2} parent=0 // pred_check_branch
    %12 = sbr.rel (0) target = $region9
  $region8: #{aap_cls2_forward.2} parent=0 // pred_region
    _
  $region9: #{aap_cls2_forward.2} parent=0 // pred_fallthru
    _
  // Predicated region
  $region10: #{aap_cls2_forward.2} parent=0 // pred_check
    _
  $region11: #{aap_cls2_forward.2} parent=0 // pred_check_branch
    %14 = sbr.rel (0) target = $region13
  $region12: #{aap_cls2_forward.2} parent=0 // pred_region
    _
  $region13: #{aap_cls2_forward.2} parent=0 // pred_fallthru
    _
  // Predicated region
  $region14: #{aap_cls2_forward.2} parent=0 // pred_check
    _
  $region15: #{aap_cls2_forward.2} parent=0 // pred_check_branch
    %16 = sbr.rel (0) target = $region17
  $region16: #{aap_cls2_forward.2} parent=0 // pred_region
    _
  $region17: #{aap_cls2_forward.2} parent=0 // pred_fallthru
    _
  %v18 = vld [vmem:[%s0] sm:$0xf]
  %v19 = vld [vmem:[%s0 + $0x4] sm:$0xf]
  %v20 = vld [vmem:[%s0 + $0x8] sm:$0xf]
  %v21 = vld [vmem:[%s0 + $0xc] sm:$0xf]
  %v22 = vld [vmem:[%s0 + $0x10] sm:$0xf]
  %v23 = vld [vmem:[%s0 + $0x14] sm:$0xf]
  %v24 = vld [vmem:[%s0 + $0x18] sm:$0xf]
  %v25 = vld [vmem:[%s0 + $0x1c] sm:$0xf]
  %v26 = vld [vmem:[%s0 + $0x20] sm:$0xf]
  %v27 = vld [vmem:[%s0 + $0x24] sm:$0xf]
  %v28 = vld [vmem:[%s0 + $0x28] sm:$0xf]
  %v29 = vld [vmem:[%s0 + $0x2c] sm:$0xf]
  %v30 = vld [vmem:[%s0 + $0x30] sm:$0xf]
  %v31 = vld [vmem:[%s0 + $0x34] sm:$0xf]
  %v32 = vld [vmem:[%s0 + $0x38] sm:$0xf]
  %v33 = vld [vmem:[%s0 + $0x3c] sm:$0xf]
  %v34 = vld [vmem:[%s0 + $0x40] sm:$0xf]
  %v35 = vld [vmem:[%s0 + $0x44] sm:$0xf]
  %v36 = vld [vmem:[%s0 + $0x48] sm:$0xf]
  %v37 = vld [vmem:[%s0 + $0x4c] sm:$0xf]
  %v38 = vld [vmem:[%s0 + $0x50] sm:$0xf]
  %v39 = vld [vmem:[%s0 + $0x54] sm:$0xf]
  %v40 = vld [vmem:[%s0 + $0x58] sm:$0xf]
  %v41 = vld [vmem:[%s0 + $0x5c] sm:$0xf]
  %v42 = vld [vmem:[%s0 + $0x60] sm:$0xf]
  %v43 = vld [vmem:[%s0 + $0x64] sm:$0xf]
  %v44 = vld [vmem:[%s0 + $0x68] sm:$0xf]
  %v45 = vld [vmem:[%s0 + $0x6c] sm:$0xf]
  %v46 = vld [vmem:[%s0 + $0x70] sm:$0xf]
  %v47 = vld [vmem:[%s0 + $0x74] sm:$0xf]
  %v48 = vld [vmem:[%s0 + $0x78] sm:$0xf]
  %v49 = vld [vmem:[%s0 + $0x7c] sm:$0xf]
  %v50 = vld [vmem:[%s0 + $0x80] sm:$0xf]
  %v51 = vld [vmem:[%s0 + $0x84] sm:$0xf]
  %v52 = vld [vmem:[%s0 + $0x88] sm:$0xf]
  %v53 = vld [vmem:[%s0 + $0x8c] sm:$0xf]
  %v54 = vld [vmem:[%s0 + $0x90] sm:$0xf]
  %v55 = vld [vmem:[%s0 + $0x94] sm:$0xf]
  %v56 = vld [vmem:[%s0 + $0x98] sm:$0xf]
  %v57 = vld [vmem:[%s0 + $0x9c] sm:$0xf]
  %v58 = vld [vmem:[%s0 + $0xa0] sm:$0xf]
  %v59 = vld [vmem:[%s0 + $0xa4] sm:$0xf]
  %v60 = vld [vmem:[%s0 + $0xa8] sm:$0xf]
  %v61 = vld [vmem:[%s0 + $0xac] sm:$0xf]
  %v62 = vld [vmem:[%s0 + $0xb0] sm:$0xf]
  %v63 = vld [vmem:[%s0 + $0xb4] sm:$0xf]
  %v64 = vld [vmem:[%s0 + $0xb8] sm:$0xf]
  %v65 = vld [vmem:[%s0 + $0xbc] sm:$0xf]
  %v66 = vld [vmem:[%s0 + $0xc0] sm:$0xf]
  %v67 = vld [vmem:[%s0 + $0xc4] sm:$0xf]
  %v68 = vld [vmem:[%s0 + $0xc8] sm:$0xf]
  %v69 = vld [vmem:[%s0 + $0xcc] sm:$0xf]
  %v70 = vld [vmem:[%s0 + $0xd0] sm:$0xf]
  %v71 = vld [vmem:[%s0 + $0xd4] sm:$0xf]
  %v72 = vld [vmem:[%s0 + $0xd8] sm:$0xf]
  %v73 = vld [vmem:[%s0 + $0xdc] sm:$0xf]
  %v74 = vld [vmem:[%s0 + $0xe0] sm:$0xf]
  %v75 = vld [vmem:[%s0 + $0xe4] sm:$0xf]
  %v76 = vld [vmem:[%s0 + $0xe8] sm:$0xf]
  %v77 = vld [vmem:[%s0 + $0xec] sm:$0xf]
  %v78 = vld [vmem:[%s0 + $0xf0] sm:$0xf]
  %v79 = vld [vmem:[%s0 + $0xf4] sm:$0xf]
  %v80 = vld [vmem:[%s0 + $0xf8] sm:$0xf]
  %v81 = vld [vmem:[%s0 + $0xfc] sm:$0xf]
  %v82 = vld [vmem:[%s1] sm:$0xf]
  %v83 = vld [vmem:[%s1 + $0x4] sm:$0xf]
  %v84 = vld [vmem:[%s1 + $0x8] sm:$0xf]
  %v85 = vld [vmem:[%s1 + $0xc] sm:$0xf]
  %v86 = vld [vmem:[%s1 + $0x10] sm:$0x3]
  %v87 = vld [vmem:[%s2] sm:$0x1]
  %v89 = vperm.slane %v87, 0
  %v155 = vunpack.c.l.b16 %v18
  %v156 = vunpack.c.l.b16 %v19
  %v157 = vunpack.c.l.b16 %v20
  %v158 = vunpack.c.l.b16 %v21
  %v159 = vunpack.c.l.b16 %v22
  %v160 = vunpack.c.l.b16 %v23
  %v161 = vunpack.c.l.b16 %v24
  %v162 = vunpack.c.l.b16 %v25
  %v163 = vunpack.c.l.b16 %v26
  %v164 = vunpack.c.l.b16 %v27
  %v165 = vunpack.c.l.b16 %v28
  %v166 = vunpack.c.l.b16 %v29
  %v167 = vunpack.c.l.b16 %v30
  %v168 = vunpack.c.l.b16 %v31
  %v169 = vunpack.c.l.b16 %v32
  %v170 = vunpack.c.l.b16 %v33
  %v171 = vunpack.c.l.b16 %v34
  %v172 = vunpack.c.l.b16 %v35
  %v173 = vunpack.c.l.b16 %v36
  %v174 = vunpack.c.l.b16 %v37
  %v175 = vunpack.c.l.b16 %v38
  %v176 = vunpack.c.l.b16 %v39
  %v177 = vunpack.c.l.b16 %v40
  %v178 = vunpack.c.l.b16 %v41
  %v179 = vunpack.c.l.b16 %v42
  %v180 = vunpack.c.l.b16 %v43
  %v181 = vunpack.c.l.b16 %v44
  %v182 = vunpack.c.l.b16 %v45
  %v183 = vunpack.c.l.b16 %v46
  %v184 = vunpack.c.l.b16 %v47
  %v185 = vunpack.c.l.b16 %v48
  %v186 = vunpack.c.l.b16 %v49
  %v187 = vunpack.c.l.b16 %v50
  %v188 = vunpack.c.l.b16 %v51
  %v189 = vunpack.c.l.b16 %v52
  %v190 = vunpack.c.l.b16 %v53
  %v191 = vunpack.c.l.b16 %v54
  %v192 = vunpack.c.l.b16 %v55
  %v193 = vunpack.c.l.b16 %v56
  %v194 = vunpack.c.l.b16 %v57
  %v195 = vunpack.c.l.b16 %v58
  %v196 = vunpack.c.l.b16 %v59
  %v197 = vunpack.c.l.b16 %v60
  %v198 = vunpack.c.l.b16 %v61
  %v199 = vunpack.c.l.b16 %v62
  %v200 = vunpack.c.l.b16 %v63
  %v201 = vunpack.c.l.b16 %v64
  %v202 = vunpack.c.l.b16 %v65
  %v203 = vunpack.c.l.b16 %v66
  %v204 = vunpack.c.l.b16 %v67
  %v205 = vunpack.c.l.b16 %v68
  %v206 = vunpack.c.l.b16 %v69
  %v207 = vunpack.c.l.b16 %v70
  %v208 = vunpack.c.l.b16 %v71
  %v209 = vunpack.c.l.b16 %v72
  %v210 = vunpack.c.l.b16 %v73
  %v211 = vunpack.c.l.b16 %v74
  %v212 = vunpack.c.l.b16 %v75
  %v213 = vunpack.c.l.b16 %v76
  %v214 = vunpack.c.l.b16 %v77
  %v215 = vunpack.c.l.b16 %v78
  %v216 = vunpack.c.l.b16 %v79
  %v217 = vunpack.c.l.b16 %v80
  %v218 = vunpack.c.l.b16 %v81
  %v219 = vpack.c.b16 %v156, %v155
  %v220 = vpack.c.b16 %v158, %v157
  %v221 = vpack.c.b16 %v160, %v159
  %v222 = vpack.c.b16 %v162, %v161
  %v223 = vpack.c.b16 %v164, %v163
  %v224 = vpack.c.b16 %v166, %v165
  %v225 = vpack.c.b16 %v168, %v167
  %v226 = vpack.c.b16 %v170, %v169
  %v227 = vpack.c.b16 %v172, %v171
  %v228 = vpack.c.b16 %v174, %v173
  %v229 = vpack.c.b16 %v176, %v175
  %v230 = vpack.c.b16 %v178, %v177
  %v231 = vpack.c.b16 %v180, %v179
  %v232 = vpack.c.b16 %v182, %v181
  %v233 = vpack.c.b16 %v184, %v183
  %v234 = vpack.c.b16 %v186, %v185
  %v235 = vpack.c.b16 %v188, %v187
  %v236 = vpack.c.b16 %v190, %v189
  %v237 = vpack.c.b16 %v192, %v191
  %v238 = vpack.c.b16 %v194, %v193
  %v239 = vpack.c.b16 %v196, %v195
  %v240 = vpack.c.b16 %v198, %v197
  %v241 = vpack.c.b16 %v200, %v199
  %v242 = vpack.c.b16 %v202, %v201
  %v243 = vpack.c.b16 %v204, %v203
  %v244 = vpack.c.b16 %v206, %v205
  %v245 = vpack.c.b16 %v208, %v207
  %v246 = vpack.c.b16 %v210, %v209
  %v247 = vpack.c.b16 %v212, %v211
  %v248 = vpack.c.b16 %v214, %v213
  %v249 = vpack.c.b16 %v216, %v215
  %v250 = vpack.c.b16 %v218, %v217
  %v256 = vunpack.c.l.b16 %v82
  %v257 = vunpack.c.l.b16 %v83
  %v258 = vunpack.c.l.b16 %v84
  %v259 = vunpack.c.l.b16 %v85
  %v260 = vunpack.c.l.b16 %v86
  %v261 = vpack.c.b16 %v257, %v256
  %v262 = vpack.c.b16 %v259, %v258
  %v263 = vpack.c.b16 %v260, %v260
  %vm266 = vcmask 293888
  %v268 = vsel %vm266, %v219, 0
  %v271 = vsel %vm266, %v220, 0
  %v274 = vsel %vm266, %v221, 0
  %v277 = vsel %vm266, %v222, 0
  %v280 = vsel %vm266, %v223, 0
  %v283 = vsel %vm266, %v224, 0
  %v286 = vsel %vm266, %v225, 0
  %v289 = vsel %vm266, %v226, 0
  %v292 = vsel %vm266, %v227, 0
  %v295 = vsel %vm266, %v228, 0
  %v298 = vsel %vm266, %v229, 0
  %v301 = vsel %vm266, %v230, 0
  %v304 = vsel %vm266, %v231, 0
  %v307 = vsel %vm266, %v232, 0
  %v310 = vsel %vm266, %v233, 0
  %v313 = vsel %vm266, %v234, 0
  %v316 = vsel %vm266, %v235, 0
  %v319 = vsel %vm266, %v236, 0
  %v322 = vsel %vm266, %v237, 0
  %v325 = vsel %vm266, %v238, 0
  %v328 = vsel %vm266, %v239, 0
  %v331 = vsel %vm266, %v240, 0
  %v334 = vsel %vm266, %v241, 0
  %v337 = vsel %vm266, %v242, 0
  %v340 = vsel %vm266, %v243, 0
  %v343 = vsel %vm266, %v244, 0
  %v346 = vsel %vm266, %v245, 0
  %v349 = vsel %vm266, %v246, 0
  %v352 = vsel %vm266, %v247, 0
  %v355 = vsel %vm266, %v248, 0
  %v358 = vsel %vm266, %v249, 0
  %v361 = vsel %vm266, %v250, 0
  %vm363 = vcmask 1041408
  %v365 = vsel %vm363, %v263, 0
  %367 = vmatpush.bf16.msra.mxu0 0
  %368 = vmatpush.bf16.msra.mxu0 0
  %369 = vmatpush.bf16.msra.mxu0 0
  %370 = vmatpush.bf16.msra.mxu0 0
  %371 = vmatpush.bf16.msra.mxu0 0
  %372 = vmatpush.bf16.msra.mxu0 %v365
  %373 = vmatpush.bf16.msra.mxu0 %v262
  %374 = vmatpush.bf16.msra.mxu0 %v261
  %375 = vmatmul.bf16.gmra.mxu0 %v268
  %v376 = vpop.f32.mrf.mxu0
  %v377 = vadd.f32 %v89, %v376
  %v378 = vpop.f32.mrf.mxu0
  %v379 = vadd.f32 %v89, %v378
  %380 = vmatmul.bf16.gmra.mxu0 %v271
  %v381 = vpop.f32.mrf.mxu0
  %v382 = vadd.f32 %v89, %v381
  %v383 = vpop.f32.mrf.mxu0
  %v384 = vadd.f32 %v89, %v383
  %385 = vmatmul.bf16.gmra.mxu0 %v274
  %v386 = vpop.f32.mrf.mxu0
  %v387 = vadd.f32 %v89, %v386
  %v388 = vpop.f32.mrf.mxu0
  %v389 = vadd.f32 %v89, %v388
  %390 = vmatmul.bf16.gmra.mxu0 %v277
  %v391 = vpop.f32.mrf.mxu0
  %v392 = vadd.f32 %v89, %v391
  %v393 = vpop.f32.mrf.mxu0
  %v394 = vadd.f32 %v89, %v393
  %395 = vmatmul.bf16.gmra.mxu0 %v280
  %v396 = vpop.f32.mrf.mxu0
  %v397 = vadd.f32 %v89, %v396
  %v398 = vpop.f32.mrf.mxu0
  %v399 = vadd.f32 %v89, %v398
  %400 = vmatmul.bf16.gmra.mxu0 %v283
  %v401 = vpop.f32.mrf.mxu0
  %v402 = vadd.f32 %v89, %v401
  %v403 = vpop.f32.mrf.mxu0
  %v404 = vadd.f32 %v89, %v403
  %405 = vmatmul.bf16.gmra.mxu0 %v286
  %v406 = vpop.f32.mrf.mxu0
  %v407 = vadd.f32 %v89, %v406
  %v408 = vpop.f32.mrf.mxu0
  %v409 = vadd.f32 %v89, %v408
  %410 = vmatmul.bf16.gmra.mxu0 %v289
  %v411 = vpop.f32.mrf.mxu0
  %v412 = vadd.f32 %v89, %v411
  %v413 = vpop.f32.mrf.mxu0
  %v414 = vadd.f32 %v89, %v413
  %415 = vmatmul.bf16.gmra.mxu0 %v292
  %v416 = vpop.f32.mrf.mxu0
  %v417 = vadd.f32 %v89, %v416
  %v418 = vpop.f32.mrf.mxu0
  %v419 = vadd.f32 %v89, %v418
  %420 = vmatmul.bf16.gmra.mxu0 %v295
  %v421 = vpop.f32.mrf.mxu0
  %v422 = vadd.f32 %v89, %v421
  %v423 = vpop.f32.mrf.mxu0
  %v424 = vadd.f32 %v89, %v423
  %425 = vmatmul.bf16.gmra.mxu0 %v298
  %v426 = vpop.f32.mrf.mxu0
  %v427 = vadd.f32 %v89, %v426
  %v428 = vpop.f32.mrf.mxu0
  %v429 = vadd.f32 %v89, %v428
  %430 = vmatmul.bf16.gmra.mxu0 %v301
  %v431 = vpop.f32.mrf.mxu0
  %v432 = vadd.f32 %v89, %v431
  %v433 = vpop.f32.mrf.mxu0
  %v434 = vadd.f32 %v89, %v433
  %435 = vmatmul.bf16.gmra.mxu0 %v304
  %v436 = vpop.f32.mrf.mxu0
  %v437 = vadd.f32 %v89, %v436
  %v438 = vpop.f32.mrf.mxu0
  %v439 = vadd.f32 %v89, %v438
  %440 = vmatmul.bf16.gmra.mxu0 %v307
  %v441 = vpop.f32.mrf.mxu0
  %v442 = vadd.f32 %v89, %v441
  %v443 = vpop.f32.mrf.mxu0
  %v444 = vadd.f32 %v89, %v443
  %445 = vmatmul.bf16.gmra.mxu0 %v310
  %v446 = vpop.f32.mrf.mxu0
  %v447 = vadd.f32 %v89, %v446
  %v448 = vpop.f32.mrf.mxu0
  %v449 = vadd.f32 %v89, %v448
  %450 = vmatmul.bf16.gmra.mxu0 %v313
  %v451 = vpop.f32.mrf.mxu0
  %v452 = vadd.f32 %v89, %v451
  %v453 = vpop.f32.mrf.mxu0
  %v454 = vadd.f32 %v89, %v453
  %455 = vmatmul.bf16.gmra.mxu0 %v316
  %v456 = vpop.f32.mrf.mxu0
  %v457 = vadd.f32 %v89, %v456
  %v458 = vpop.f32.mrf.mxu0
  %v459 = vadd.f32 %v89, %v458
  %460 = vmatmul.bf16.gmra.mxu0 %v319
  %v461 = vpop.f32.mrf.mxu0
  %v462 = vadd.f32 %v89, %v461
  %v463 = vpop.f32.mrf.mxu0
  %v464 = vadd.f32 %v89, %v463
  %465 = vmatmul.bf16.gmra.mxu0 %v322
  %v466 = vpop.f32.mrf.mxu0
  %v467 = vadd.f32 %v89, %v466
  %v468 = vpop.f32.mrf.mxu0
  %v469 = vadd.f32 %v89, %v468
  %470 = vmatmul.bf16.gmra.mxu0 %v325
  %v471 = vpop.f32.mrf.mxu0
  %v472 = vadd.f32 %v89, %v471
  %v473 = vpop.f32.mrf.mxu0
  %v474 = vadd.f32 %v89, %v473
  %475 = vmatmul.bf16.gmra.mxu0 %v328
  %v476 = vpop.f32.mrf.mxu0
  %v477 = vadd.f32 %v89, %v476
  %v478 = vpop.f32.mrf.mxu0
  %v479 = vadd.f32 %v89, %v478
  %480 = vmatmul.bf16.gmra.mxu0 %v331
  %v481 = vpop.f32.mrf.mxu0
  %v482 = vadd.f32 %v89, %v481
  %v483 = vpop.f32.mrf.mxu0
  %v484 = vadd.f32 %v89, %v483
  %485 = vmatmul.bf16.gmra.mxu0 %v334
  %v486 = vpop.f32.mrf.mxu0
  %v487 = vadd.f32 %v89, %v486
  %v488 = vpop.f32.mrf.mxu0
  %v489 = vadd.f32 %v89, %v488
  %490 = vmatmul.bf16.gmra.mxu0 %v337
  %v491 = vpop.f32.mrf.mxu0
  %v492 = vadd.f32 %v89, %v491
  %v493 = vpop.f32.mrf.mxu0
  %v494 = vadd.f32 %v89, %v493
  %495 = vmatmul.bf16.gmra.mxu0 %v340
  %v496 = vpop.f32.mrf.mxu0
  %v497 = vadd.f32 %v89, %v496
  %v498 = vpop.f32.mrf.mxu0
  %v499 = vadd.f32 %v89, %v498
  %500 = vmatmul.bf16.gmra.mxu0 %v343
  %v501 = vpop.f32.mrf.mxu0
  %v502 = vadd.f32 %v89, %v501
  %v503 = vpop.f32.mrf.mxu0
  %v504 = vadd.f32 %v89, %v503
  %505 = vmatmul.bf16.gmra.mxu0 %v346
  %v506 = vpop.f32.mrf.mxu0
  %v507 = vadd.f32 %v89, %v506
  %v508 = vpop.f32.mrf.mxu0
  %v509 = vadd.f32 %v89, %v508
  %510 = vmatmul.bf16.gmra.mxu0 %v349
  %v511 = vpop.f32.mrf.mxu0
  %v512 = vadd.f32 %v89, %v511
  %v513 = vpop.f32.mrf.mxu0
  %v514 = vadd.f32 %v89, %v513
  %515 = vmatmul.bf16.gmra.mxu0 %v352
  %v516 = vpop.f32.mrf.mxu0
  %v517 = vadd.f32 %v89, %v516
  %v518 = vpop.f32.mrf.mxu0
  %v519 = vadd.f32 %v89, %v518
  %520 = vmatmul.bf16.gmra.mxu0 %v355
  %v521 = vpop.f32.mrf.mxu0
  %v522 = vadd.f32 %v89, %v521
  %v523 = vpop.f32.mrf.mxu0
  %v524 = vadd.f32 %v89, %v523
  %525 = vmatmul.bf16.gmra.mxu0 %v358
  %v526 = vpop.f32.mrf.mxu0
  %v527 = vadd.f32 %v89, %v526
  %v528 = vpop.f32.mrf.mxu0
  %v529 = vadd.f32 %v89, %v528
  %530 = vmatmul.bf16.gmra.mxu0 %v361
  %v531 = vpop.f32.mrf.mxu0
  %v532 = vadd.f32 %v89, %v531
  %v533 = vpop.f32.mrf.mxu0
  %v534 = vadd.f32 %v89, %v533
  %535 = vdwg.mxu0
  %vm536 = vcmask 523264
  %v537 = vsel %vm536, %v377, 0.0
  %v538 = vsel %vm536, %v379, 0.0
  %v539 = vadd.f32 %v537, %v538
  %v540 = vsel %vm536, %v382, 0.0
  %v541 = vadd.f32 %v539, %v540
  %v542 = vsel %vm536, %v384, 0.0
  %v543 = vadd.f32 %v541, %v542
  %v544 = vsel %vm536, %v387, 0.0
  %v545 = vadd.f32 %v543, %v544
  %v546 = vsel %vm536, %v389, 0.0
  %v547 = vadd.f32 %v545, %v546
  %v548 = vsel %vm536, %v392, 0.0
  %v549 = vadd.f32 %v547, %v548
  %v550 = vsel %vm536, %v394, 0.0
  %v551 = vadd.f32 %v549, %v550
  %v552 = vsel %vm536, %v397, 0.0
  %v553 = vadd.f32 %v551, %v552
  %v554 = vsel %vm536, %v399, 0.0
  %v555 = vadd.f32 %v553, %v554
  %v556 = vsel %vm536, %v402, 0.0
  %v557 = vadd.f32 %v555, %v556
  %v558 = vsel %vm536, %v404, 0.0
  %v559 = vadd.f32 %v557, %v558
  %v560 = vsel %vm536, %v407, 0.0
  %v561 = vadd.f32 %v559, %v560
  %v562 = vsel %vm536, %v409, 0.0
  %v563 = vadd.f32 %v561, %v562
  %v564 = vsel %vm536, %v412, 0.0
  %v565 = vadd.f32 %v563, %v564
  %v566 = vsel %vm536, %v414, 0.0
  %v567 = vadd.f32 %v565, %v566
  %v568 = vsel %vm536, %v417, 0.0
  %v569 = vadd.f32 %v567, %v568
  %v570 = vsel %vm536, %v419, 0.0
  %v571 = vadd.f32 %v569, %v570
  %v572 = vsel %vm536, %v422, 0.0
  %v573 = vadd.f32 %v571, %v572
  %v574 = vsel %vm536, %v424, 0.0
  %v575 = vadd.f32 %v573, %v574
  %v576 = vsel %vm536, %v427, 0.0
  %v577 = vadd.f32 %v575, %v576
  %v578 = vsel %vm536, %v429, 0.0
  %v579 = vadd.f32 %v577, %v578
  %v580 = vsel %vm536, %v432, 0.0
  %v581 = vadd.f32 %v579, %v580
  %v582 = vsel %vm536, %v434, 0.0
  %v583 = vadd.f32 %v581, %v582
  %v584 = vsel %vm536, %v437, 0.0
  %v585 = vadd.f32 %v583, %v584
  %v586 = vsel %vm536, %v439, 0.0
  %v587 = vadd.f32 %v585, %v586
  %v588 = vsel %vm536, %v442, 0.0
  %v589 = vadd.f32 %v587, %v588
  %v590 = vsel %vm536, %v444, 0.0
  %v591 = vadd.f32 %v589, %v590
  %v592 = vsel %vm536, %v447, 0.0
  %v593 = vadd.f32 %v591, %v592
  %v594 = vsel %vm536, %v449, 0.0
  %v595 = vadd.f32 %v593, %v594
  %v596 = vsel %vm536, %v452, 0.0
  %v597 = vadd.f32 %v595, %v596
  %v598 = vsel %vm536, %v454, 0.0
  %v599 = vadd.f32 %v597, %v598
  %v600 = vsel %vm536, %v457, 0.0
  %v601 = vadd.f32 %v599, %v600
  %v602 = vsel %vm536, %v459, 0.0
  %v603 = vadd.f32 %v601, %v602
  %v604 = vsel %vm536, %v462, 0.0
  %v605 = vadd.f32 %v603, %v604
  %v606 = vsel %vm536, %v464, 0.0
  %v607 = vadd.f32 %v605, %v606
  %v608 = vsel %vm536, %v467, 0.0
  %v609 = vadd.f32 %v607, %v608
  %v610 = vsel %vm536, %v469, 0.0
  %v611 = vadd.f32 %v609, %v610
  %v612 = vsel %vm536, %v472, 0.0
  %v613 = vadd.f32 %v611, %v612
  %v614 = vsel %vm536, %v474, 0.0
  %v615 = vadd.f32 %v613, %v614
  %v616 = vsel %vm536, %v477, 0.0
  %v617 = vadd.f32 %v615, %v616
  %v618 = vsel %vm536, %v479, 0.0
  %v619 = vadd.f32 %v617, %v618
  %v620 = vsel %vm536, %v482, 0.0
  %v621 = vadd.f32 %v619, %v620
  %v622 = vsel %vm536, %v484, 0.0
  %v623 = vadd.f32 %v621, %v622
  %v624 = vsel %vm536, %v487, 0.0
  %v625 = vadd.f32 %v623, %v624
  %v626 = vsel %vm536, %v489, 0.0
  %v627 = vadd.f32 %v625, %v626
  %v628 = vsel %vm536, %v492, 0.0
  %v629 = vadd.f32 %v627, %v628
  %v630 = vsel %vm536, %v494, 0.0
  %v631 = vadd.f32 %v629, %v630
  %v632 = vsel %vm536, %v497, 0.0
  %v633 = vadd.f32 %v631, %v632
  %v634 = vsel %vm536, %v499, 0.0
  %v635 = vadd.f32 %v633, %v634
  %v636 = vsel %vm536, %v502, 0.0
  %v637 = vadd.f32 %v635, %v636
  %v638 = vsel %vm536, %v504, 0.0
  %v639 = vadd.f32 %v637, %v638
  %v640 = vsel %vm536, %v507, 0.0
  %v641 = vadd.f32 %v639, %v640
  %v642 = vsel %vm536, %v509, 0.0
  %v643 = vadd.f32 %v641, %v642
  %v644 = vsel %vm536, %v512, 0.0
  %v645 = vadd.f32 %v643, %v644
  %v646 = vsel %vm536, %v514, 0.0
  %v647 = vadd.f32 %v645, %v646
  %v648 = vsel %vm536, %v517, 0.0
  %v649 = vadd.f32 %v647, %v648
  %v650 = vsel %vm536, %v519, 0.0
  %v651 = vadd.f32 %v649, %v650
  %v652 = vsel %vm536, %v522, 0.0
  %v653 = vadd.f32 %v651, %v652
  %v654 = vsel %vm536, %v524, 0.0
  %v655 = vadd.f32 %v653, %v654
  %v656 = vsel %vm536, %v527, 0.0
  %v657 = vadd.f32 %v655, %v656
  %v658 = vsel %vm536, %v529, 0.0
  %v659 = vadd.f32 %v657, %v658
  %v660 = vsel %vm536, %v532, 0.0
  %v661 = vadd.f32 %v659, %v660
  %v662 = vsel %vm536, %v534, 0.0
  %v663 = vadd.f32 %v661, %v662
  %v664 = vrot.slane %v663, 4
  %v665 = vadd.f32 %v663, %v664
  %v666 = vrot.slane %v665, 2
  %v667 = vadd.f32 %v665, %v666
  %v668 = vrot.slane %v667, 1
  %v669 = vadd.f32 %v667, %v668
  %v670 = vmul.f32 %v669, 0.001953125
  %v671 = vmul.f32 %v377, %v377
  %v672 = vmul.f32 %v379, %v379
  %v673 = vmul.f32 %v382, %v382
  %v674 = vmul.f32 %v384, %v384
  %v675 = vmul.f32 %v387, %v387
  %v676 = vmul.f32 %v389, %v389
  %v677 = vmul.f32 %v392, %v392
  %v678 = vmul.f32 %v394, %v394
  %v679 = vmul.f32 %v397, %v397
  %v680 = vmul.f32 %v399, %v399
  %v681 = vmul.f32 %v402, %v402
  %v682 = vmul.f32 %v404, %v404
  %v683 = vmul.f32 %v407, %v407
  %v684 = vmul.f32 %v409, %v409
  %v685 = vmul.f32 %v412, %v412
  %v686 = vmul.f32 %v414, %v414
  %v687 = vmul.f32 %v417, %v417
  %v688 = vmul.f32 %v419, %v419
  %v689 = vmul.f32 %v422, %v422
  %v690 = vmul.f32 %v424, %v424
  %v691 = vmul.f32 %v427, %v427
  %v692 = vmul.f32 %v429, %v429
  %v693 = vmul.f32 %v432, %v432
  %v694 = vmul.f32 %v434, %v434
  %v695 = vmul.f32 %v437, %v437
  %v696 = vmul.f32 %v439, %v439
  %v697 = vmul.f32 %v442, %v442
  %v698 = vmul.f32 %v444, %v444
  %v699 = vmul.f32 %v447, %v447
  %v700 = vmul.f32 %v449, %v449
  %v701 = vmul.f32 %v452, %v452
  %v702 = vmul.f32 %v454, %v454
  %v703 = vmul.f32 %v457, %v457
  %v704 = vmul.f32 %v459, %v459
  %v705 = vmul.f32 %v462, %v462
  %v706 = vmul.f32 %v464, %v464
  %v707 = vmul.f32 %v467, %v467
  %v708 = vmul.f32 %v469, %v469
  %v709 = vmul.f32 %v472, %v472
  %v710 = vmul.f32 %v474, %v474
  %v711 = vmul.f32 %v477, %v477
  %v712 = vmul.f32 %v479, %v479
  %v713 = vmul.f32 %v482, %v482
  %v714 = vmul.f32 %v484, %v484
  %v715 = vmul.f32 %v487, %v487
  %v716 = vmul.f32 %v489, %v489
  %v717 = vmul.f32 %v492, %v492
  %v718 = vmul.f32 %v494, %v494
  %v719 = vmul.f32 %v497, %v497
  %v720 = vmul.f32 %v499, %v499
  %v721 = vmul.f32 %v502, %v502
  %v722 = vmul.f32 %v504, %v504
  %v723 = vmul.f32 %v507, %v507
  %v724 = vmul.f32 %v509, %v509
  %v725 = vmul.f32 %v512, %v512
  %v726 = vmul.f32 %v514, %v514
  %v727 = vmul.f32 %v517, %v517
  %v728 = vmul.f32 %v519, %v519
  %v729 = vmul.f32 %v522, %v522
  %v730 = vmul.f32 %v524, %v524
  %v731 = vmul.f32 %v527, %v527
  %v732 = vmul.f32 %v529, %v529
  %v733 = vmul.f32 %v532, %v532
  %v734 = vmul.f32 %v534, %v534
  %v735 = vsel %vm536, %v671, 0.0
  %v736 = vsel %vm536, %v672, 0.0
  %v737 = vadd.f32 %v735, %v736
  %v738 = vsel %vm536, %v673, 0.0
  %v739 = vadd.f32 %v737, %v738
  %v740 = vsel %vm536, %v674, 0.0
  %v741 = vadd.f32 %v739, %v740
  %v742 = vsel %vm536, %v675, 0.0
  %v743 = vadd.f32 %v741, %v742
  %v744 = vsel %vm536, %v676, 0.0
  %v745 = vadd.f32 %v743, %v744
  %v746 = vsel %vm536, %v677, 0.0
  %v747 = vadd.f32 %v745, %v746
  %v748 = vsel %vm536, %v678, 0.0
  %v749 = vadd.f32 %v747, %v748
  %v750 = vsel %vm536, %v679, 0.0
  %v751 = vadd.f32 %v749, %v750
  %v752 = vsel %vm536, %v680, 0.0
  %v753 = vadd.f32 %v751, %v752
  %v754 = vsel %vm536, %v681, 0.0
  %v755 = vadd.f32 %v753, %v754
  %v756 = vsel %vm536, %v682, 0.0
  %v757 = vadd.f32 %v755, %v756
  %v758 = vsel %vm536, %v683, 0.0
  %v759 = vadd.f32 %v757, %v758
  %v760 = vsel %vm536, %v684, 0.0
  %v761 = vadd.f32 %v759, %v760
  %v762 = vsel %vm536, %v685, 0.0
  %v763 = vadd.f32 %v761, %v762
  %v764 = vsel %vm536, %v686, 0.0
  %v765 = vadd.f32 %v763, %v764
  %v766 = vsel %vm536, %v687, 0.0
  %v767 = vadd.f32 %v765, %v766
  %v768 = vsel %vm536, %v688, 0.0
  %v769 = vadd.f32 %v767, %v768
  %v770 = vsel %vm536, %v689, 0.0
  %v771 = vadd.f32 %v769, %v770
  %v772 = vsel %vm536, %v690, 0.0
  %v773 = vadd.f32 %v771, %v772
  %v774 = vsel %vm536, %v691, 0.0
  %v775 = vadd.f32 %v773, %v774
  %v776 = vsel %vm536, %v692, 0.0
  %v777 = vadd.f32 %v775, %v776
  %v778 = vsel %vm536, %v693, 0.0
  %v779 = vadd.f32 %v777, %v778
  %v780 = vsel %vm536, %v694, 0.0
  %v781 = vadd.f32 %v779, %v780
  %v782 = vsel %vm536, %v695, 0.0
  %v783 = vadd.f32 %v781, %v782
  %v784 = vsel %vm536, %v696, 0.0
  %v785 = vadd.f32 %v783, %v784
  %v786 = vsel %vm536, %v697, 0.0
  %v787 = vadd.f32 %v785, %v786
  %v788 = vsel %vm536, %v698, 0.0
  %v789 = vadd.f32 %v787, %v788
  %v790 = vsel %vm536, %v699, 0.0
  %v791 = vadd.f32 %v789, %v790
  %v792 = vsel %vm536, %v700, 0.0
  %v793 = vadd.f32 %v791, %v792
  %v794 = vsel %vm536, %v701, 0.0
  %v795 = vadd.f32 %v793, %v794
  %v796 = vsel %vm536, %v702, 0.0
  %v797 = vadd.f32 %v795, %v796
  %v798 = vsel %vm536, %v703, 0.0
  %v799 = vadd.f32 %v797, %v798
  %v800 = vsel %vm536, %v704, 0.0
  %v801 = vadd.f32 %v799, %v800
  %v802 = vsel %vm536, %v705, 0.0
  %v803 = vadd.f32 %v801, %v802
  %v804 = vsel %vm536, %v706, 0.0
  %v805 = vadd.f32 %v803, %v804
  %v806 = vsel %vm536, %v707, 0.0
  %v807 = vadd.f32 %v805, %v806
  %v808 = vsel %vm536, %v708, 0.0
  %v809 = vadd.f32 %v807, %v808
  %v810 = vsel %vm536, %v709, 0.0
  %v811 = vadd.f32 %v809, %v810
  %v812 = vsel %vm536, %v710, 0.0
  %v813 = vadd.f32 %v811, %v812
  %v814 = vsel %vm536, %v711, 0.0
  %v815 = vadd.f32 %v813, %v814
  %v816 = vsel %vm536, %v712, 0.0
  %v817 = vadd.f32 %v815, %v816
  %v818 = vsel %vm536, %v713, 0.0
  %v819 = vadd.f32 %v817, %v818
  %v820 = vsel %vm536, %v714, 0.0
  %v821 = vadd.f32 %v819, %v820
  %v822 = vsel %vm536, %v715, 0.0
  %v823 = vadd.f32 %v821, %v822
  %v824 = vsel %vm536, %v716, 0.0
  %v825 = vadd.f32 %v823, %v824
  %v826 = vsel %vm536, %v717, 0.0
  %v827 = vadd.f32 %v825, %v826
  %v828 = vsel %vm536, %v718, 0.0
  %v829 = vadd.f32 %v827, %v828
  %v830 = vsel %vm536, %v719, 0.0
  %v831 = vadd.f32 %v829, %v830
  %v832 = vsel %vm536, %v720, 0.0
  %v833 = vadd.f32 %v831, %v832
  %v834 = vsel %vm536, %v721, 0.0
  %v835 = vadd.f32 %v833, %v834
  %v836 = vsel %vm536, %v722, 0.0
  %v837 = vadd.f32 %v835, %v836
  %v838 = vsel %vm536, %v723, 0.0
  %v839 = vadd.f32 %v837, %v838
  %v840 = vsel %vm536, %v724, 0.0
  %v841 = vadd.f32 %v839, %v840
  %v842 = vsel %vm536, %v725, 0.0
  %v843 = vadd.f32 %v841, %v842
  %v844 = vsel %vm536, %v726, 0.0
  %v845 = vadd.f32 %v843, %v844
  %v846 = vsel %vm536, %v727, 0.0
  %v847 = vadd.f32 %v845, %v846
  %v848 = vsel %vm536, %v728, 0.0
  %v849 = vadd.f32 %v847, %v848
  %v850 = vsel %vm536, %v729, 0.0
  %v851 = vadd.f32 %v849, %v850
  %v852 = vsel %vm536, %v730, 0.0
  %v853 = vadd.f32 %v851, %v852
  %v854 = vsel %vm536, %v731, 0.0
  %v855 = vadd.f32 %v853, %v854
  %v856 = vsel %vm536, %v732, 0.0
  %v857 = vadd.f32 %v855, %v856
  %v858 = vsel %vm536, %v733, 0.0
  %v859 = vadd.f32 %v857, %v858
  %v860 = vsel %vm536, %v734, 0.0
  %v861 = vadd.f32 %v859, %v860
  %v862 = vrot.slane %v861, 4
  %v863 = vadd.f32 %v861, %v862
  %v864 = vrot.slane %v863, 2
  %v865 = vadd.f32 %v863, %v864
  %v866 = vrot.slane %v865, 1
  %v867 = vadd.f32 %v865, %v866
  %v868 = vmul.f32 %v867, 0.001953125
  %v869 = vmul.f32 %v670, %v670
  %v870 = vsub.f32 %v868, %v869
  %v871 = vmax.f32 %v870, 0.0
  %v872 = vsub.f32 %v377, %v670
  %v873 = vsub.f32 %v379, %v670
  %v874 = vsub.f32 %v382, %v670
  %v875 = vsub.f32 %v384, %v670
  %v876 = vsub.f32 %v387, %v670
  %v877 = vsub.f32 %v389, %v670
  %v878 = vsub.f32 %v392, %v670
  %v879 = vsub.f32 %v394, %v670
  %v880 = vsub.f32 %v397, %v670
  %v881 = vsub.f32 %v399, %v670
  %v882 = vsub.f32 %v402, %v670
  %v883 = vsub.f32 %v404, %v670
  %v884 = vsub.f32 %v407, %v670
  %v885 = vsub.f32 %v409, %v670
  %v886 = vsub.f32 %v412, %v670
  %v887 = vsub.f32 %v414, %v670
  %v888 = vsub.f32 %v417, %v670
  %v889 = vsub.f32 %v419, %v670
  %v890 = vsub.f32 %v422, %v670
  %v891 = vsub.f32 %v424, %v670
  %v892 = vsub.f32 %v427, %v670
  %v893 = vsub.f32 %v429, %v670
  %v894 = vsub.f32 %v432, %v670
  %v895 = vsub.f32 %v434, %v670
  %v896 = vsub.f32 %v437, %v670
  %v897 = vsub.f32 %v439, %v670
  %v898 = vsub.f32 %v442, %v670
  %v899 = vsub.f32 %v444, %v670
  %v900 = vsub.f32 %v447, %v670
  %v901 = vsub.f32 %v449, %v670
  %v902 = vsub.f32 %v452, %v670
  %v903 = vsub.f32 %v454, %v670
  %v904 = vsub.f32 %v457, %v670
  %v905 = vsub.f32 %v459, %v670
  %v906 = vsub.f32 %v462, %v670
  %v907 = vsub.f32 %v464, %v670
  %v908 = vsub.f32 %v467, %v670
  %v909 = vsub.f32 %v469, %v670
  %v910 = vsub.f32 %v472, %v670
  %v911 = vsub.f32 %v474, %v670
  %v912 = vsub.f32 %v477, %v670
  %v913 = vsub.f32 %v479, %v670
  %v914 = vsub.f32 %v482, %v670
  %v915 = vsub.f32 %v484, %v670
  %v916 = vsub.f32 %v487, %v670
  %v917 = vsub.f32 %v489, %v670
  %v918 = vsub.f32 %v492, %v670
  %v919 = vsub.f32 %v494, %v670
  %v920 = vsub.f32 %v497, %v670
  %v921 = vsub.f32 %v499, %v670
  %v922 = vsub.f32 %v502, %v670
  %v923 = vsub.f32 %v504, %v670
  %v924 = vsub.f32 %v507, %v670
  %v925 = vsub.f32 %v509, %v670
  %v926 = vsub.f32 %v512, %v670
  %v927 = vsub.f32 %v514, %v670
  %v928 = vsub.f32 %v517, %v670
  %v929 = vsub.f32 %v519, %v670
  %v930 = vsub.f32 %v522, %v670
  %v931 = vsub.f32 %v524, %v670
  %v932 = vsub.f32 %v527, %v670
  %v933 = vsub.f32 %v529, %v670
  %v934 = vsub.f32 %v532, %v670
  %v935 = vsub.f32 %v534, %v670
  %v936 = vadd.f32 %v871, 1e-05
  %v937 = vrsqrt.pop %v936
  %v938 = vmul.f32 %v937, %v936
  %v939 = vmul.f32 %v938, %v937
  %v940 = vmul.f32 0.5, %v939
  %v941 = vsub.f32 1.5, %v940
  %v942 = vmul.f32 %v937, %v941
  %vm943 = vweird.f32 %v936
  %vm944 = vweird.f32 %v937
  %vm945 = vmor %vm943, %vm944
  %v946 = vsel %vm945, %v937, %v942
  %v947 = vmul.f32 %v872, %v946
  %v948 = vmul.f32 %v873, %v946
  %v949 = vmul.f32 %v874, %v946
  %v950 = vmul.f32 %v875, %v946
  %v951 = vmul.f32 %v876, %v946
  %v952 = vmul.f32 %v877, %v946
  %v953 = vmul.f32 %v878, %v946
  %v954 = vmul.f32 %v879, %v946
  %v955 = vmul.f32 %v880, %v946
  %v956 = vmul.f32 %v881, %v946
  %v957 = vmul.f32 %v882, %v946
  %v958 = vmul.f32 %v883, %v946
  %v959 = vmul.f32 %v884, %v946
  %v960 = vmul.f32 %v885, %v946
  %v961 = vmul.f32 %v886, %v946
  %v962 = vmul.f32 %v887, %v946
  %v963 = vmul.f32 %v888, %v946
  %v964 = vmul.f32 %v889, %v946
  %v965 = vmul.f32 %v890, %v946
  %v966 = vmul.f32 %v891, %v946
  %v967 = vmul.f32 %v892, %v946
  %v968 = vmul.f32 %v893, %v946
  %v969 = vmul.f32 %v894, %v946
  %v970 = vmul.f32 %v895, %v946
  %v971 = vmul.f32 %v896, %v946
  %v972 = vmul.f32 %v897, %v946
  %v973 = vmul.f32 %v898, %v946
  %v974 = vmul.f32 %v899, %v946
  %v975 = vmul.f32 %v900, %v946
  %v976 = vmul.f32 %v901, %v946
  %v977 = vmul.f32 %v902, %v946
  %v978 = vmul.f32 %v903, %v946
  %v979 = vmul.f32 %v904, %v946
  %v980 = vmul.f32 %v905, %v946
  %v981 = vmul.f32 %v906, %v946
  %v982 = vmul.f32 %v907, %v946
  %v983 = vmul.f32 %v908, %v946
  %v984 = vmul.f32 %v909, %v946
  %v985 = vmul.f32 %v910, %v946
  %v986 = vmul.f32 %v911, %v946
  %v987 = vmul.f32 %v912, %v946
  %v988 = vmul.f32 %v913, %v946
  %v989 = vmul.f32 %v914, %v946
  %v990 = vmul.f32 %v915, %v946
  %v991 = vmul.f32 %v916, %v946
  %v992 = vmul.f32 %v917, %v946
  %v993 = vmul.f32 %v918, %v946
  %v994 = vmul.f32 %v919, %v946
  %v995 = vmul.f32 %v920, %v946
  %v996 = vmul.f32 %v921, %v946
  %v997 = vmul.f32 %v922, %v946
  %v998 = vmul.f32 %v923, %v946
  %v999 = vmul.f32 %v924, %v946
  %v1000 = vmul.f32 %v925, %v946
  %v1001 = vmul.f32 %v926, %v946
  %v1002 = vmul.f32 %v927, %v946
  %v1003 = vmul.f32 %v928, %v946
  %v1004 = vmul.f32 %v929, %v946
  %v1005 = vmul.f32 %v930, %v946
  %v1006 = vmul.f32 %v931, %v946
  %v1007 = vmul.f32 %v932, %v946
  %v1008 = vmul.f32 %v933, %v946
  %v1009 = vmul.f32 %v934, %v946
  %v1010 = vmul.f32 %v935, %v946
  %v1011 = vmax.f32 %v947, 0.0
  %v1012 = vmax.f32 %v948, 0.0
  %v1013 = vmax.f32 %v949, 0.0
  %v1014 = vmax.f32 %v950, 0.0
  %v1015 = vmax.f32 %v951, 0.0
  %v1016 = vmax.f32 %v952, 0.0
  %v1017 = vmax.f32 %v953, 0.0
  %v1018 = vmax.f32 %v954, 0.0
  %v1019 = vmax.f32 %v955, 0.0
  %v1020 = vmax.f32 %v956, 0.0
  %v1021 = vmax.f32 %v957, 0.0
  %v1022 = vmax.f32 %v958, 0.0
  %v1023 = vmax.f32 %v959, 0.0
  %v1024 = vmax.f32 %v960, 0.0
  %v1025 = vmax.f32 %v961, 0.0
  %v1026 = vmax.f32 %v962, 0.0
  %v1027 = vmax.f32 %v963, 0.0
  %v1028 = vmax.f32 %v964, 0.0
  %v1029 = vmax.f32 %v965, 0.0
  %v1030 = vmax.f32 %v966, 0.0
  %v1031 = vmax.f32 %v967, 0.0
  %v1032 = vmax.f32 %v968, 0.0
  %v1033 = vmax.f32 %v969, 0.0
  %v1034 = vmax.f32 %v970, 0.0
  %v1035 = vmax.f32 %v971, 0.0
  %v1036 = vmax.f32 %v972, 0.0
  %v1037 = vmax.f32 %v973, 0.0
  %v1038 = vmax.f32 %v974, 0.0
  %v1039 = vmax.f32 %v975, 0.0
  %v1040 = vmax.f32 %v976, 0.0
  %v1041 = vmax.f32 %v977, 0.0
  %v1042 = vmax.f32 %v978, 0.0
  %v1043 = vmax.f32 %v979, 0.0
  %v1044 = vmax.f32 %v980, 0.0
  %v1045 = vmax.f32 %v981, 0.0
  %v1046 = vmax.f32 %v982, 0.0
  %v1047 = vmax.f32 %v983, 0.0
  %v1048 = vmax.f32 %v984, 0.0
  %v1049 = vmax.f32 %v985, 0.0
  %v1050 = vmax.f32 %v986, 0.0
  %v1051 = vmax.f32 %v987, 0.0
  %v1052 = vmax.f32 %v988, 0.0
  %v1053 = vmax.f32 %v989, 0.0
  %v1054 = vmax.f32 %v990, 0.0
  %v1055 = vmax.f32 %v991, 0.0
  %v1056 = vmax.f32 %v992, 0.0
  %v1057 = vmax.f32 %v993, 0.0
  %v1058 = vmax.f32 %v994, 0.0
  %v1059 = vmax.f32 %v995, 0.0
  %v1060 = vmax.f32 %v996, 0.0
  %v1061 = vmax.f32 %v997, 0.0
  %v1062 = vmax.f32 %v998, 0.0
  %v1063 = vmax.f32 %v999, 0.0
  %v1064 = vmax.f32 %v1000, 0.0
  %v1065 = vmax.f32 %v1001, 0.0
  %v1066 = vmax.f32 %v1002, 0.0
  %v1067 = vmax.f32 %v1003, 0.0
  %v1068 = vmax.f32 %v1004, 0.0
  %v1069 = vmax.f32 %v1005, 0.0
  %v1070 = vmax.f32 %v1006, 0.0
  %v1071 = vmax.f32 %v1007, 0.0
  %v1072 = vmax.f32 %v1008, 0.0
  %v1073 = vmax.f32 %v1009, 0.0
  %v1074 = vmax.f32 %v1010, 0.0
  %v1075 = vld [vmem:[%s3] sm:$0xff]
  %v1076 = vld [vmem:[%s3 + $0x8] sm:$0xff]
  %v1077 = vld [vmem:[%s3 + $0x10] sm:$0xff]
  %v1078 = vld [vmem:[%s3 + $0x18] sm:$0xff]
  %v1079 = vld [vmem:[%s3 + $0x20] sm:$0xff]
  %v1080 = vld [vmem:[%s3 + $0x28] sm:$0xff]
  %v1081 = vld [vmem:[%s3 + $0x30] sm:$0xff]
  %v1082 = vld [vmem:[%s3 + $0x38] sm:$0xff]
  %v1083 = vld [vmem:[%s3 + $0x40] sm:$0xff]
  %v1084 = vld [vmem:[%s3 + $0x48] sm:$0xff]
  %v1085 = vld [vmem:[%s3 + $0x50] sm:$0xff]
  %v1086 = vld [vmem:[%s3 + $0x58] sm:$0xff]
  %v1087 = vld [vmem:[%s3 + $0x60] sm:$0xff]
  %v1088 = vld [vmem:[%s3 + $0x68] sm:$0xff]
  %v1089 = vld [vmem:[%s3 + $0x70] sm:$0xff]
  %v1090 = vld [vmem:[%s3 + $0x78] sm:$0xff]
  %v1091 = vld [vmem:[%s3 + $0x80] sm:$0xff]
  %v1092 = vld [vmem:[%s3 + $0x88] sm:$0xff]
  %v1093 = vld [vmem:[%s3 + $0x90] sm:$0xff]
  %v1094 = vld [vmem:[%s3 + $0x98] sm:$0xff]
  %v1095 = vld [vmem:[%s3 + $0xa0] sm:$0xff]
  %v1096 = vld [vmem:[%s3 + $0xa8] sm:$0xff]
  %v1097 = vld [vmem:[%s3 + $0xb0] sm:$0xff]
  %v1098 = vld [vmem:[%s3 + $0xb8] sm:$0xff]
  %v1099 = vld [vmem:[%s3 + $0xc0] sm:$0xff]
  %v1100 = vld [vmem:[%s3 + $0xc8] sm:$0xff]
  %v1101 = vld [vmem:[%s3 + $0xd0] sm:$0xff]
  %v1102 = vld [vmem:[%s3 + $0xd8] sm:$0xff]
  %v1103 = vld [vmem:[%s3 + $0xe0] sm:$0xff]
  %v1104 = vld [vmem:[%s3 + $0xe8] sm:$0xff]
  %v1105 = vld [vmem:[%s3 + $0xf0] sm:$0xff]
  %v1106 = vld [vmem:[%s3 + $0xf8] sm:$0xff]
  %v1107 = vadd.f32 %v1011, %v1075
  %v1108 = vadd.f32 %v1012, %v1076
  %v1109 = vadd.f32 %v1013, %v1077
  %v1110 = vadd.f32 %v1014, %v1078
  %v1111 = vadd.f32 %v1015, %v1079
  %v1112 = vadd.f32 %v1016, %v1080
  %v1113 = vadd.f32 %v1017, %v1081
  %v1114 = vadd.f32 %v1018, %v1082
  %v1115 = vadd.f32 %v1019, %v1083
  %v1116 = vadd.f32 %v1020, %v1084
  %v1117 = vadd.f32 %v1021, %v1085
  %v1118 = vadd.f32 %v1022, %v1086
  %v1119 = vadd.f32 %v1023, %v1087
  %v1120 = vadd.f32 %v1024, %v1088
  %v1121 = vadd.f32 %v1025, %v1089
  %v1122 = vadd.f32 %v1026, %v1090
  %v1123 = vadd.f32 %v1027, %v1091
  %v1124 = vadd.f32 %v1028, %v1092
  %v1125 = vadd.f32 %v1029, %v1093
  %v1126 = vadd.f32 %v1030, %v1094
  %v1127 = vadd.f32 %v1031, %v1095
  %v1128 = vadd.f32 %v1032, %v1096
  %v1129 = vadd.f32 %v1033, %v1097
  %v1130 = vadd.f32 %v1034, %v1098
  %v1131 = vadd.f32 %v1035, %v1099
  %v1132 = vadd.f32 %v1036, %v1100
  %v1133 = vadd.f32 %v1037, %v1101
  %v1134 = vadd.f32 %v1038, %v1102
  %v1135 = vadd.f32 %v1039, %v1103
  %v1136 = vadd.f32 %v1040, %v1104
  %v1137 = vadd.f32 %v1041, %v1105
  %v1138 = vadd.f32 %v1042, %v1106
  %v1139 = vadd.f32 %v1043, %v1075
  %v1140 = vadd.f32 %v1044, %v1076
  %v1141 = vadd.f32 %v1045, %v1077
  %v1142 = vadd.f32 %v1046, %v1078
  %v1143 = vadd.f32 %v1047, %v1079
  %v1144 = vadd.f32 %v1048, %v1080
  %v1145 = vadd.f32 %v1049, %v1081
  %v1146 = vadd.f32 %v1050, %v1082
  %v1147 = vadd.f32 %v1051, %v1083
  %v1148 = vadd.f32 %v1052, %v1084
  %v1149 = vadd.f32 %v1053, %v1085
  %v1150 = vadd.f32 %v1054, %v1086
  %v1151 = vadd.f32 %v1055, %v1087
  %v1152 = vadd.f32 %v1056, %v1088
  %v1153 = vadd.f32 %v1057, %v1089
  %v1154 = vadd.f32 %v1058, %v1090
  %v1155 = vadd.f32 %v1059, %v1091
  %v1156 = vadd.f32 %v1060, %v1092
  %v1157 = vadd.f32 %v1061, %v1093
  %v1158 = vadd.f32 %v1062, %v1094
  %v1159 = vadd.f32 %v1063, %v1095
  %v1160 = vadd.f32 %v1064, %v1096
  %v1161 = vadd.f32 %v1065, %v1097
  %v1162 = vadd.f32 %v1066, %v1098
  %v1163 = vadd.f32 %v1067, %v1099
  %v1164 = vadd.f32 %v1068, %v1100
  %v1165 = vadd.f32 %v1069, %v1101
  %v1166 = vadd.f32 %v1070, %v1102
  %v1167 = vadd.f32 %v1071, %v1103
  %v1168 = vadd.f32 %v1072, %v1104
  %v1169 = vadd.f32 %v1073, %v1105
  %v1170 = vadd.f32 %v1074, %v1106
  %v1171 = vpack.c.bf16 %v1107, %v1107
  %v1172 = vpack.c.bf16 %v1108, %v1108
  %v1173 = vpack.c.bf16 %v1109, %v1109
  %v1174 = vpack.c.bf16 %v1110, %v1110
  %v1175 = vpack.c.bf16 %v1111, %v1111
  %v1176 = vpack.c.bf16 %v1112, %v1112
  %v1177 = vpack.c.bf16 %v1113, %v1113
  %v1178 = vpack.c.bf16 %v1114, %v1114
  %v1179 = vpack.c.bf16 %v1115, %v1115
  %v1180 = vpack.c.bf16 %v1116, %v1116
  %v1181 = vpack.c.bf16 %v1117, %v1117
  %v1182 = vpack.c.bf16 %v1118, %v1118
  %v1183 = vpack.c.bf16 %v1119, %v1119
  %v1184 = vpack.c.bf16 %v1120, %v1120
  %v1185 = vpack.c.bf16 %v1121, %v1121
  %v1186 = vpack.c.bf16 %v1122, %v1122
  %v1187 = vpack.c.bf16 %v1123, %v1123
  %v1188 = vpack.c.bf16 %v1124, %v1124
  %v1189 = vpack.c.bf16 %v1125, %v1125
  %v1190 = vpack.c.bf16 %v1126, %v1126
  %v1191 = vpack.c.bf16 %v1127, %v1127
  %v1192 = vpack.c.bf16 %v1128, %v1128
  %v1193 = vpack.c.bf16 %v1129, %v1129
  %v1194 = vpack.c.bf16 %v1130, %v1130
  %v1195 = vpack.c.bf16 %v1131, %v1131
  %v1196 = vpack.c.bf16 %v1132, %v1132
  %v1197 = vpack.c.bf16 %v1133, %v1133
  %v1198 = vpack.c.bf16 %v1134, %v1134
  %v1199 = vpack.c.bf16 %v1135, %v1135
  %v1200 = vpack.c.bf16 %v1136, %v1136
  %v1201 = vpack.c.bf16 %v1137, %v1137
  %v1202 = vpack.c.bf16 %v1138, %v1138
  %v1203 = vpack.c.bf16 %v1139, %v1139
  %v1204 = vpack.c.bf16 %v1140, %v1140
  %v1205 = vpack.c.bf16 %v1141, %v1141
  %v1206 = vpack.c.bf16 %v1142, %v1142
  %v1207 = vpack.c.bf16 %v1143, %v1143
  %v1208 = vpack.c.bf16 %v1144, %v1144
  %v1209 = vpack.c.bf16 %v1145, %v1145
  %v1210 = vpack.c.bf16 %v1146, %v1146
  %v1211 = vpack.c.bf16 %v1147, %v1147
  %v1212 = vpack.c.bf16 %v1148, %v1148
  %v1213 = vpack.c.bf16 %v1149, %v1149
  %v1214 = vpack.c.bf16 %v1150, %v1150
  %v1215 = vpack.c.bf16 %v1151, %v1151
  %v1216 = vpack.c.bf16 %v1152, %v1152
  %v1217 = vpack.c.bf16 %v1153, %v1153
  %v1218 = vpack.c.bf16 %v1154, %v1154
  %v1219 = vpack.c.bf16 %v1155, %v1155
  %v1220 = vpack.c.bf16 %v1156, %v1156
  %v1221 = vpack.c.bf16 %v1157, %v1157
  %v1222 = vpack.c.bf16 %v1158, %v1158
  %v1223 = vpack.c.bf16 %v1159, %v1159
  %v1224 = vpack.c.bf16 %v1160, %v1160
  %v1225 = vpack.c.bf16 %v1161, %v1161
  %v1226 = vpack.c.bf16 %v1162, %v1162
  %v1227 = vpack.c.bf16 %v1163, %v1163
  %v1228 = vpack.c.bf16 %v1164, %v1164
  %v1229 = vpack.c.bf16 %v1165, %v1165
  %v1230 = vpack.c.bf16 %v1166, %v1166
  %v1231 = vpack.c.bf16 %v1167, %v1167
  %v1232 = vpack.c.bf16 %v1168, %v1168
  %v1233 = vpack.c.bf16 %v1169, %v1169
  %v1234 = vpack.c.bf16 %v1170, %v1170
  %vm1235 = vcmask 519168
  %1236 = vst.msk [vmem:[%s4] sm:$0xf] %vm1235, %v1171
  %1237 = vst.msk [vmem:[%s4 + $0x4] sm:$0xf] %vm1235, %v1172
  %1238 = vst.msk [vmem:[%s4 + $0x8] sm:$0xf] %vm1235, %v1173
  %1239 = vst.msk [vmem:[%s4 + $0xc] sm:$0xf] %vm1235, %v1174
  %1240 = vst.msk [vmem:[%s4 + $0x10] sm:$0xf] %vm1235, %v1175
  %1241 = vst.msk [vmem:[%s4 + $0x14] sm:$0xf] %vm1235, %v1176
  %1242 = vst.msk [vmem:[%s4 + $0x18] sm:$0xf] %vm1235, %v1177
  %1243 = vst.msk [vmem:[%s4 + $0x1c] sm:$0xf] %vm1235, %v1178
  %1244 = vst.msk [vmem:[%s4 + $0x20] sm:$0xf] %vm1235, %v1179
  %1245 = vst.msk [vmem:[%s4 + $0x24] sm:$0xf] %vm1235, %v1180
  %1246 = vst.msk [vmem:[%s4 + $0x28] sm:$0xf] %vm1235, %v1181
  %1247 = vst.msk [vmem:[%s4 + $0x2c] sm:$0xf] %vm1235, %v1182
  %1248 = vst.msk [vmem:[%s4 + $0x30] sm:$0xf] %vm1235, %v1183
  %1249 = vst.msk [vmem:[%s4 + $0x34] sm:$0xf] %vm1235, %v1184
  %1250 = vst.msk [vmem:[%s4 + $0x38] sm:$0xf] %vm1235, %v1185
  %1251 = vst.msk [vmem:[%s4 + $0x3c] sm:$0xf] %vm1235, %v1186
  %1252 = vst.msk [vmem:[%s4 + $0x40] sm:$0xf] %vm1235, %v1187
  %1253 = vst.msk [vmem:[%s4 + $0x44] sm:$0xf] %vm1235, %v1188
  %1254 = vst.msk [vmem:[%s4 + $0x48] sm:$0xf] %vm1235, %v1189
  %1255 = vst.msk [vmem:[%s4 + $0x4c] sm:$0xf] %vm1235, %v1190
  %1256 = vst.msk [vmem:[%s4 + $0x50] sm:$0xf] %vm1235, %v1191
  %1257 = vst.msk [vmem:[%s4 + $0x54] sm:$0xf] %vm1235, %v1192
  %1258 = vst.msk [vmem:[%s4 + $0x58] sm:$0xf] %vm1235, %v1193
  %1259 = vst.msk [vmem:[%s4 + $0x5c] sm:$0xf] %vm1235, %v1194
  %1260 = vst.msk [vmem:[%s4 + $0x60] sm:$0xf] %vm1235, %v1195
  %1261 = vst.msk [vmem:[%s4 + $0x64] sm:$0xf] %vm1235, %v1196
  %1262 = vst.msk [vmem:[%s4 + $0x68] sm:$0xf] %vm1235, %v1197
  %1263 = vst.msk [vmem:[%s4 + $0x6c] sm:$0xf] %vm1235, %v1198
  %1264 = vst.msk [vmem:[%s4 + $0x70] sm:$0xf] %vm1235, %v1199
  %1265 = vst.msk [vmem:[%s4 + $0x74] sm:$0xf] %vm1235, %v1200
  %1266 = vst.msk [vmem:[%s4 + $0x78] sm:$0xf] %vm1235, %v1201
  %1267 = vst.msk [vmem:[%s4 + $0x7c] sm:$0xf] %vm1235, %v1202
  %1268 = vst.msk [vmem:[%s4 + $0x80] sm:$0xf] %vm1235, %v1203
  %1269 = vst.msk [vmem:[%s4 + $0x84] sm:$0xf] %vm1235, %v1204
  %1270 = vst.msk [vmem:[%s4 + $0x88] sm:$0xf] %vm1235, %v1205
  %1271 = vst.msk [vmem:[%s4 + $0x8c] sm:$0xf] %vm1235, %v1206
  %1272 = vst.msk [vmem:[%s4 + $0x90] sm:$0xf] %vm1235, %v1207
  %1273 = vst.msk [vmem:[%s4 + $0x94] sm:$0xf] %vm1235, %v1208
  %1274 = vst.msk [vmem:[%s4 + $0x98] sm:$0xf] %vm1235, %v1209
  %1275 = vst.msk [vmem:[%s4 + $0x9c] sm:$0xf] %vm1235, %v1210
  %1276 = vst.msk [vmem:[%s4 + $0xa0] sm:$0xf] %vm1235, %v1211
  %1277 = vst.msk [vmem:[%s4 + $0xa4] sm:$0xf] %vm1235, %v1212
  %1278 = vst.msk [vmem:[%s4 + $0xa8] sm:$0xf] %vm1235, %v1213
  %1279 = vst.msk [vmem:[%s4 + $0xac] sm:$0xf] %vm1235, %v1214
  %1280 = vst.msk [vmem:[%s4 + $0xb0] sm:$0xf] %vm1235, %v1215
  %1281 = vst.msk [vmem:[%s4 + $0xb4] sm:$0xf] %vm1235, %v1216
  %1282 = vst.msk [vmem:[%s4 + $0xb8] sm:$0xf] %vm1235, %v1217
  %1283 = vst.msk [vmem:[%s4 + $0xbc] sm:$0xf] %vm1235, %v1218
  %1284 = vst.msk [vmem:[%s4 + $0xc0] sm:$0xf] %vm1235, %v1219
  %1285 = vst.msk [vmem:[%s4 + $0xc4] sm:$0xf] %vm1235, %v1220
  %1286 = vst.msk [vmem:[%s4 + $0xc8] sm:$0xf] %vm1235, %v1221
  %1287 = vst.msk [vmem:[%s4 + $0xcc] sm:$0xf] %vm1235, %v1222
  %1288 = vst.msk [vmem:[%s4 + $0xd0] sm:$0xf] %vm1235, %v1223
  %1289 = vst.msk [vmem:[%s4 + $0xd4] sm:$0xf] %vm1235, %v1224
  %1290 = vst.msk [vmem:[%s4 + $0xd8] sm:$0xf] %vm1235, %v1225
  %1291 = vst.msk [vmem:[%s4 + $0xdc] sm:$0xf] %vm1235, %v1226
  %1292 = vst.msk [vmem:[%s4 + $0xe0] sm:$0xf] %vm1235, %v1227
  %1293 = vst.msk [vmem:[%s4 + $0xe4] sm:$0xf] %vm1235, %v1228
  %1294 = vst.msk [vmem:[%s4 + $0xe8] sm:$0xf] %vm1235, %v1229
  %1295 = vst.msk [vmem:[%s4 + $0xec] sm:$0xf] %vm1235, %v1230
  %1296 = vst.msk [vmem:[%s4 + $0xf0] sm:$0xf] %vm1235, %v1231
  %1297 = vst.msk [vmem:[%s4 + $0xf4] sm:$0xf] %vm1235, %v1232
  %1298 = vst.msk [vmem:[%s4 + $0xf8] sm:$0xf] %vm1235, %v1233
  %1299 = vst.msk [vmem:[%s4 + $0xfc] sm:$0xf] %vm1235, %v1234
  // Predicated region
  $region18: #{aap_cls2_forward.2} parent=0 // pred_check
    _
  $region19: #{aap_cls2_forward.2} parent=0 // pred_check_branch
    %1301 = sbr.rel (0) target = $region21
  $region20: #{aap_cls2_forward.2} parent=0 // pred_region
    _
  $region21: #{aap_cls2_forward.2} parent=0 // pred_fallthru
    _
  // Predicated region
  $region22: #{aap_cls2_forward.2} parent=0 // pred_check
    _
  $region23: #{aap_cls2_forward.2} parent=0 // pred_check_branch
    %1303 = sbr.rel (0) target = $region25
  $region24: #{aap_cls2_forward.2} parent=0 // pred_region
    _
  $region25: #{aap_cls2_forward.2} parent=0 // pred_fallthru
    _

// kernel: aap_cls2_forward.3
$region0: #{aap_cls2_forward.3}
  #allocation0 [shape = 'u32[]', space=smem, size = 0x4, offset = 0x4, fixed_abs, tag = 'smem constant byte address 0x4 - core index']
  #allocation1 [shape = 'u32[72,128]{1,0:T(1,128)}', space=vmem, size = 0x9000, scoped, tag = 'internal scratch']
  %s0 = inlined_call_operand.vmem [shape: bf16[128,576], index: 0, kind: input, shape index: {}]
  %s1 = inlined_call_operand.vmem [shape: bf16[576,64], index: 1, kind: input, shape index: {}]
  %s2 = inlined_call_operand.vmem [shape: f32[1,64], index: 2, kind: input, shape index: {}]
  %s3 = inlined_call_operand.vmem [shape: f32[128,128], index: 3, kind: input, shape index: {}]
  %s4 = inlined_call_operand.vmem [shape: bf16[1024,128], index: 4, kind: input, shape index: {}]
  %s5 = inlined_call_operand.vmem [shape: f32[1,128], index: 5, kind: input, shape index: {}]
  %s6 = inlined_call_operand.vmem [shape: f32[128,10], index: 6, kind: input, shape index: {}]
  %s7 = inlined_call_operand.vmem [shape: f32[1,10], index: 7, kind: input, shape index: {}]
  %s8 = inlined_call_operand.hbm [shape: f32[2,10], index: 8, kind: output, shape index: {}]
  %s9 = sld [smem:[#allocation0]]
  $region42: #{aap_cls2_forward.3} parent=0
    _
  %s11 = ssub.s32 1, %s9
  %s12 = scalar_select 0, %s11, %s9
  $region1: #{aap_cls2_forward.3} parent=0
    #allocation2 [shape = 'u8[1024]{0}', space=vmem, size = 0x400, scoped, tag = 'output window, operand 0, single buffered']
    #allocation3 [shape = 's32[1]{0}', space=sflag, size = 0x4, scoped, tag = 'scoped memory for aap_cls2_forward.3']
    %13 = vsyncpa [#allocation3], 0
    // Predicated region
    $region2: #{aap_cls2_forward.3} parent=1 // pred_check
      _
    $region3: #{aap_cls2_forward.3} parent=1 // pred_check_branch
      %15 = sbr.rel (0) target = $region5
    $region4: #{aap_cls2_forward.3} parent=1 // pred_region
      _
    $region5: #{aap_cls2_forward.3} parent=1 // pred_fallthru
      _
    // Predicated region
    $region6: #{aap_cls2_forward.3} parent=1 // pred_check
      _
    $region7: #{aap_cls2_forward.3} parent=1 // pred_check_branch
      %17 = sbr.rel (0) target = $region9
    $region8: #{aap_cls2_forward.3} parent=1 // pred_region
      _
    $region9: #{aap_cls2_forward.3} parent=1 // pred_fallthru
      _
    // Predicated region
    $region10: #{aap_cls2_forward.3} parent=1 // pred_check
      _
    $region11: #{aap_cls2_forward.3} parent=1 // pred_check_branch
      %19 = sbr.rel (0) target = $region13
    $region12: #{aap_cls2_forward.3} parent=1 // pred_region
      _
    $region13: #{aap_cls2_forward.3} parent=1 // pred_fallthru
      _
    // Predicated region
    $region14: #{aap_cls2_forward.3} parent=1 // pred_check
      _
    $region15: #{aap_cls2_forward.3} parent=1 // pred_check_branch
      %21 = sbr.rel (0) target = $region17
    $region16: #{aap_cls2_forward.3} parent=1 // pred_region
      _
    $region17: #{aap_cls2_forward.3} parent=1 // pred_fallthru
      _
    // Predicated region
    $region18: #{aap_cls2_forward.3} parent=1 // pred_check
      _
    $region19: #{aap_cls2_forward.3} parent=1 // pred_check_branch
      %23 = sbr.rel (0) target = $region21
    $region20: #{aap_cls2_forward.3} parent=1 // pred_region
      _
    $region21: #{aap_cls2_forward.3} parent=1 // pred_fallthru
      _
    // Predicated region
    $region22: #{aap_cls2_forward.3} parent=1 // pred_check
      _
    $region23: #{aap_cls2_forward.3} parent=1 // pred_check_branch
      %25 = sbr.rel (0) target = $region25
    $region24: #{aap_cls2_forward.3} parent=1 // pred_region
      _
    $region25: #{aap_cls2_forward.3} parent=1 // pred_fallthru
      _
    // Predicated region
    $region26: #{aap_cls2_forward.3} parent=1 // pred_check
      _
    $region27: #{aap_cls2_forward.3} parent=1 // pred_check_branch
      %27 = sbr.rel (0) target = $region29
    $region28: #{aap_cls2_forward.3} parent=1 // pred_region
      _
    $region29: #{aap_cls2_forward.3} parent=1 // pred_fallthru
      _
    // Predicated region
    $region30: #{aap_cls2_forward.3} parent=1 // pred_check
      _
    $region31: #{aap_cls2_forward.3} parent=1 // pred_check_branch
      %29 = sbr.rel (0) target = $region33
    $region32: #{aap_cls2_forward.3} parent=1 // pred_region
      _
    $region33: #{aap_cls2_forward.3} parent=1 // pred_fallthru
      _
    %v31 = vld [vmem:[%s0] sm:$0xff]
    %v32 = vld [vmem:[%s0 + $0x8] sm:$0xff]
    %v33 = vld [vmem:[%s0 + $0x10] sm:$0xf]
    %v34 = vld [vmem:[%s0 + $0x14] sm:$0xff]
    %v35 = vld [vmem:[%s0 + $0x1c] sm:$0xff]
    %v36 = vld [vmem:[%s0 + $0x24] sm:$0xf]
    %v37 = vld [vmem:[%s0 + $0x28] sm:$0xff]
    %v38 = vld [vmem:[%s0 + $0x30] sm:$0xff]
    %v39 = vld [vmem:[%s0 + $0x38] sm:$0xf]
    %v40 = vld [vmem:[%s0 + $0x3c] sm:$0xff]
    %v41 = vld [vmem:[%s0 + $0x44] sm:$0xff]
    %v42 = vld [vmem:[%s0 + $0x4c] sm:$0xf]
    %v43 = vld [vmem:[%s0 + $0x50] sm:$0xff]
    %v44 = vld [vmem:[%s0 + $0x58] sm:$0xff]
    %v45 = vld [vmem:[%s0 + $0x60] sm:$0xf]
    %v46 = vld [vmem:[%s0 + $0x64] sm:$0xff]
    %v47 = vld [vmem:[%s0 + $0x6c] sm:$0xff]
    %v48 = vld [vmem:[%s0 + $0x74] sm:$0xf]
    %v49 = vld [vmem:[%s0 + $0x78] sm:$0xff]
    %v50 = vld [vmem:[%s0 + $0x80] sm:$0xff]
    %v51 = vld [vmem:[%s0 + $0x88] sm:$0xf]
    %v52 = vld [vmem:[%s0 + $0x8c] sm:$0xff]
    %v53 = vld [vmem:[%s0 + $0x94] sm:$0xff]
    %v54 = vld [vmem:[%s0 + $0x9c] sm:$0xf]
    %v55 = vld [vmem:[%s0 + $0xa0] sm:$0xff]
    %v56 = vld [vmem:[%s0 + $0xa8] sm:$0xff]
    %v57 = vld [vmem:[%s0 + $0xb0] sm:$0xf]
    %v58 = vld [vmem:[%s0 + $0xb4] sm:$0xff]
    %v59 = vld [vmem:[%s0 + $0xbc] sm:$0xff]
    %v60 = vld [vmem:[%s0 + $0xc4] sm:$0xf]
    %v61 = vld [vmem:[%s0 + $0xc8] sm:$0xff]
    %v62 = vld [vmem:[%s0 + $0xd0] sm:$0xff]
    %v63 = vld [vmem:[%s0 + $0xd8] sm:$0xf]
    %v64 = vld [vmem:[%s0 + $0xdc] sm:$0xff]
    %v65 = vld [vmem:[%s0 + $0xe4] sm:$0xff]
    %v66 = vld [vmem:[%s0 + $0xec] sm:$0xf]
    %v67 = vld [vmem:[%s0 + $0xf0] sm:$0xff]
    %v68 = vld [vmem:[%s0 + $0xf8] sm:$0xff]
    %v69 = vld [vmem:[%s0 + $0x100] sm:$0xf]
    %v70 = vld [vmem:[%s0 + $0x104] sm:$0xff]
    %v71 = vld [vmem:[%s0 + $0x10c] sm:$0xff]
    %v72 = vld [vmem:[%s0 + $0x114] sm:$0xf]
    %v73 = vld [vmem:[%s0 + $0x118] sm:$0xff]
    %v74 = vld [vmem:[%s0 + $0x120] sm:$0xff]
    %v75 = vld [vmem:[%s0 + $0x128] sm:$0xf]
    %v76 = vld [vmem:[%s0 + $0x12c] sm:$0xff]
    %v77 = vld [vmem:[%s0 + $0x134] sm:$0xff]
    %v78 = vld [vmem:[%s0 + $0x13c] sm:$0xf]
    %v79 = vld [vmem:[%s1] sm:$0xf]
    %v80 = vld [vmem:[%s1 + $0x4] sm:$0xf]
    %v81 = vld [vmem:[%s1 + $0x8] sm:$0xf]
    %v82 = vld [vmem:[%s1 + $0xc] sm:$0xf]
    %v83 = vld [vmem:[%s1 + $0x10] sm:$0xf]
    %v84 = vld [vmem:[%s1 + $0x14] sm:$0xf]
    %v85 = vld [vmem:[%s1 + $0x18] sm:$0xf]
    %v86 = vld [vmem:[%s1 + $0x1c] sm:$0xf]
    %v87 = vld [vmem:[%s1 + $0x20] sm:$0xf]
    %v88 = vld [vmem:[%s1 + $0x24] sm:$0xf]
    %v89 = vld [vmem:[%s1 + $0x28] sm:$0xf]
    %v90 = vld [vmem:[%s1 + $0x2c] sm:$0xf]
    %v91 = vld [vmem:[%s1 + $0x30] sm:$0xf]
    %v92 = vld [vmem:[%s1 + $0x34] sm:$0xf]
    %v93 = vld [vmem:[%s1 + $0x38] sm:$0xf]
    %v94 = vld [vmem:[%s1 + $0x3c] sm:$0xf]
    %v95 = vld [vmem:[%s1 + $0x40] sm:$0xf]
    %v96 = vld [vmem:[%s1 + $0x44] sm:$0xf]
    %v97 = vld [vmem:[%s1 + $0x48] sm:$0xf]
    %v98 = vld [vmem:[%s1 + $0x4c] sm:$0xf]
    %v99 = vld [vmem:[%s1 + $0x50] sm:$0xf]
    %v100 = vld [vmem:[%s1 + $0x54] sm:$0xf]
    %v101 = vld [vmem:[%s1 + $0x58] sm:$0xf]
    %v102 = vld [vmem:[%s1 + $0x5c] sm:$0xf]
    %v103 = vld [vmem:[%s1 + $0x60] sm:$0xf]
    %v104 = vld [vmem:[%s1 + $0x64] sm:$0xf]
    %v105 = vld [vmem:[%s1 + $0x68] sm:$0xf]
    %v106 = vld [vmem:[%s1 + $0x6c] sm:$0xf]
    %v107 = vld [vmem:[%s1 + $0x70] sm:$0xf]
    %v108 = vld [vmem:[%s1 + $0x74] sm:$0xf]
    %v109 = vld [vmem:[%s1 + $0x78] sm:$0xf]
    %v110 = vld [vmem:[%s1 + $0x7c] sm:$0xf]
    %v111 = vld [vmem:[%s1 + $0x80] sm:$0xf]
    %v112 = vld [vmem:[%s1 + $0x84] sm:$0xf]
    %v113 = vld [vmem:[%s1 + $0x88] sm:$0xf]
    %v114 = vld [vmem:[%s1 + $0x8c] sm:$0xf]
    %v115 = vld [vmem:[%s1 + $0x90] sm:$0xf]
    %v116 = vld [vmem:[%s1 + $0x94] sm:$0xf]
    %v117 = vld [vmem:[%s1 + $0x98] sm:$0xf]
    %v118 = vld [vmem:[%s1 + $0x9c] sm:$0xf]
    %v119 = vld [vmem:[%s1 + $0xa0] sm:$0xf]
    %v120 = vld [vmem:[%s1 + $0xa4] sm:$0xf]
    %v121 = vld [vmem:[%s1 + $0xa8] sm:$0xf]
    %v122 = vld [vmem:[%s1 + $0xac] sm:$0xf]
    %v123 = vld [vmem:[%s1 + $0xb0] sm:$0xf]
    %v124 = vld [vmem:[%s1 + $0xb4] sm:$0xf]
    %v125 = vld [vmem:[%s1 + $0xb8] sm:$0xf]
    %v126 = vld [vmem:[%s1 + $0xbc] sm:$0xf]
    %v127 = vld [vmem:[%s1 + $0xc0] sm:$0xf]
    %v128 = vld [vmem:[%s1 + $0xc4] sm:$0xf]
    %v129 = vld [vmem:[%s1 + $0xc8] sm:$0xf]
    %v130 = vld [vmem:[%s1 + $0xcc] sm:$0xf]
    %v131 = vld [vmem:[%s1 + $0xd0] sm:$0xf]
    %v132 = vld [vmem:[%s1 + $0xd4] sm:$0xf]
    %v133 = vld [vmem:[%s1 + $0xd8] sm:$0xf]
    %v134 = vld [vmem:[%s1 + $0xdc] sm:$0xf]
    %v135 = vld [vmem:[%s1 + $0xe0] sm:$0xf]
    %v136 = vld [vmem:[%s1 + $0xe4] sm:$0xf]
    %v137 = vld [vmem:[%s1 + $0xe8] sm:$0xf]
    %v138 = vld [vmem:[%s1 + $0xec] sm:$0xf]
    %v139 = vld [vmem:[%s1 + $0xf0] sm:$0xf]
    %v140 = vld [vmem:[%s1 + $0xf4] sm:$0xf]
    %v141 = vld [vmem:[%s1 + $0xf8] sm:$0xf]
    %v142 = vld [vmem:[%s1 + $0xfc] sm:$0xf]
    %v143 = vld [vmem:[%s1 + $0x100] sm:$0xf]
    %v144 = vld [vmem:[%s1 + $0x104] sm:$0xf]
    %v145 = vld [vmem:[%s1 + $0x108] sm:$0xf]
    %v146 = vld [vmem:[%s1 + $0x10c] sm:$0xf]
    %v147 = vld [vmem:[%s1 + $0x110] sm:$0xf]
    %v148 = vld [vmem:[%s1 + $0x114] sm:$0xf]
    %v149 = vld [vmem:[%s1 + $0x118] sm:$0xf]
    %v150 = vld [vmem:[%s1 + $0x11c] sm:$0xf]
    %v151 = vld [vmem:[%s2] sm:$0x1]
    %v153 = vperm.slane %v151, 0
    %v203 = vunpack.c.l.b16 %v31
    %v204 = vunpack.c.h.b16 %v31
    %v205 = vunpack.c.l.b16 %v32
    %v206 = vunpack.c.h.b16 %v32
    %v207 = vunpack.c.l.b16 %v33
    %v208 = vunpack.c.l.b16 %v34
    %v209 = vunpack.c.h.b16 %v34
    %v210 = vunpack.c.l.b16 %v35
    %v211 = vunpack.c.h.b16 %v35
    %v212 = vunpack.c.l.b16 %v36
    %v213 = vunpack.c.l.b16 %v37
    %v214 = vunpack.c.h.b16 %v37
    %v215 = vunpack.c.l.b16 %v38
    %v216 = vunpack.c.h.b16 %v38
    %v217 = vunpack.c.l.b16 %v39
    %v218 = vunpack.c.l.b16 %v40
    %v219 = vunpack.c.h.b16 %v40
    %v220 = vunpack.c.l.b16 %v41
    %v221 = vunpack.c.h.b16 %v41
    %v222 = vunpack.c.l.b16 %v42
    %v223 = vunpack.c.l.b16 %v43
    %v224 = vunpack.c.h.b16 %v43
    %v225 = vunpack.c.l.b16 %v44
    %v226 = vunpack.c.h.b16 %v44
    %v227 = vunpack.c.l.b16 %v45
    %v228 = vunpack.c.l.b16 %v46
    %v229 = vunpack.c.h.b16 %v46
    %v230 = vunpack.c.l.b16 %v47
    %v231 = vunpack.c.h.b16 %v47
    %v232 = vunpack.c.l.b16 %v48
    %v233 = vunpack.c.l.b16 %v49
    %v234 = vunpack.c.h.b16 %v49
    %v235 = vunpack.c.l.b16 %v50
    %v236 = vunpack.c.h.b16 %v50
    %v237 = vunpack.c.l.b16 %v51
    %v238 = vunpack.c.l.b16 %v52
    %v239 = vunpack.c.h.b16 %v52
    %v240 = vunpack.c.l.b16 %v53
    %v241 = vunpack.c.h.b16 %v53
    %v242 = vunpack.c.l.b16 %v54
    %v243 = vunpack.c.l.b16 %v55
    %v244 = vunpack.c.h.b16 %v55
    %v245 = vunpack.c.l.b16 %v56
    %v246 = vunpack.c.h.b16 %v56
    %v247 = vunpack.c.l.b16 %v57
    %v248 = vunpack.c.l.b16 %v58
    %v249 = vunpack.c.h.b16 %v58
    %v250 = vunpack.c.l.b16 %v59
    %v251 = vunpack.c.h.b16 %v59
    %v252 = vunpack.c.l.b16 %v60
    %v253 = vunpack.c.l.b16 %v61
    %v254 = vunpack.c.h.b16 %v61
    %v255 = vunpack.c.l.b16 %v62
    %v256 = vunpack.c.h.b16 %v62
    %v257 = vunpack.c.l.b16 %v63
    %v258 = vunpack.c.l.b16 %v64
    %v259 = vunpack.c.h.b16 %v64
    %v260 = vunpack.c.l.b16 %v65
    %v261 = vunpack.c.h.b16 %v65
    %v262 = vunpack.c.l.b16 %v66
    %v263 = vunpack.c.l.b16 %v67
    %v264 = vunpack.c.h.b16 %v67
    %v265 = vunpack.c.l.b16 %v68
    %v266 = vunpack.c.h.b16 %v68
    %v267 = vunpack.c.l.b16 %v69
    %v268 = vunpack.c.l.b16 %v70
    %v269 = vunpack.c.h.b16 %v70
    %v270 = vunpack.c.l.b16 %v71
    %v271 = vunpack.c.h.b16 %v71
    %v272 = vunpack.c.l.b16 %v72
    %v273 = vunpack.c.l.b16 %v73
    %v274 = vunpack.c.h.b16 %v73
    %v275 = vunpack.c.l.b16 %v74
    %v276 = vunpack.c.h.b16 %v74
    %v277 = vunpack.c.l.b16 %v75
    %v278 = vunpack.c.l.b16 %v76
    %v279 = vunpack.c.h.b16 %v76
    %v280 = vunpack.c.l.b16 %v77
    %v281 = vunpack.c.h.b16 %v77
    %v282 = vunpack.c.l.b16 %v78
    %v283 = vpack.c.b16 %v208, %v203
    %v284 = vpack.c.b16 %v209, %v204
    %v285 = vpack.c.b16 %v210, %v205
    %v286 = vpack.c.b16 %v211, %v206
    %v287 = vpack.c.b16 %v212, %v207
    %v288 = vpack.c.b16 %v218, %v213
    %v289 = vpack.c.b16 %v219, %v214
    %v290 = vpack.c.b16 %v220, %v215
    %v291 = vpack.c.b16 %v221, %v216
    %v292 = vpack.c.b16 %v222, %v217
    %v293 = vpack.c.b16 %v228, %v223
    %v294 = vpack.c.b16 %v229, %v224
    %v295 = vpack.c.b16 %v230, %v225
    %v296 = vpack.c.b16 %v231, %v226
    %v297 = vpack.c.b16 %v232, %v227
    %v298 = vpack.c.b16 %v238, %v233
    %v299 = vpack.c.b16 %v239, %v234
    %v300 = vpack.c.b16 %v240, %v235
    %v301 = vpack.c.b16 %v241, %v236
    %v302 = vpack.c.b16 %v242, %v237
    %v303 = vpack.c.b16 %v248, %v243
    %v304 = vpack.c.b16 %v249, %v244
    %v305 = vpack.c.b16 %v250, %v245
    %v306 = vpack.c.b16 %v251, %v246
    %v307 = vpack.c.b16 %v252, %v247
    %v308 = vpack.c.b16 %v258, %v253
    %v309 = vpack.c.b16 %v259, %v254
    %v310 = vpack.c.b16 %v260, %v255
    %v311 = vpack.c.b16 %v261, %v256
    %v312 = vpack.c.b16 %v262, %v257
    %v313 = vpack.c.b16 %v268, %v263
    %v314 = vpack.c.b16 %v269, %v264
    %v315 = vpack.c.b16 %v270, %v265
    %v316 = vpack.c.b16 %v271, %v266
    %v317 = vpack.c.b16 %v272, %v267
    %v318 = vpack.c.b16 %v278, %v273
    %v319 = vpack.c.b16 %v279, %v274
    %v320 = vpack.c.b16 %v280, %v275
    %v321 = vpack.c.b16 %v281, %v276
    %v322 = vpack.c.b16 %v282, %v277
    %v427 = vunpack.c.l.b16 %v79
    %v428 = vunpack.c.l.b16 %v80
    %v429 = vunpack.c.l.b16 %v81
    %v430 = vunpack.c.l.b16 %v82
    %v431 = vunpack.c.l.b16 %v83
    %v432 = vunpack.c.l.b16 %v84
    %v433 = vunpack.c.l.b16 %v85
    %v434 = vunpack.c.l.b16 %v86
    %v435 = vunpack.c.l.b16 %v87
    %v436 = vunpack.c.l.b16 %v88
    %v437 = vunpack.c.l.b16 %v89
    %v438 = vunpack.c.l.b16 %v90
    %v439 = vunpack.c.l.b16 %v91
    %v440 = vunpack.c.l.b16 %v92
    %v441 = vunpack.c.l.b16 %v93
    %v442 = vunpack.c.l.b16 %v94
    %v443 = vunpack.c.l.b16 %v95
    %v444 = vunpack.c.l.b16 %v96
    %v445 = vunpack.c.l.b16 %v97
    %v446 = vunpack.c.l.b16 %v98
    %v447 = vunpack.c.l.b16 %v99
    %v448 = vunpack.c.l.b16 %v100
    %v449 = vunpack.c.l.b16 %v101
    %v450 = vunpack.c.l.b16 %v102
    %v451 = vunpack.c.l.b16 %v103
    %v452 = vunpack.c.l.b16 %v104
    %v453 = vunpack.c.l.b16 %v105
    %v454 = vunpack.c.l.b16 %v106
    %v455 = vunpack.c.l.b16 %v107
    %v456 = vunpack.c.l.b16 %v108
    %v457 = vunpack.c.l.b16 %v109
    %v458 = vunpack.c.l.b16 %v110
    %v459 = vunpack.c.l.b16 %v111
    %v460 = vunpack.c.l.b16 %v112
    %v461 = vunpack.c.l.b16 %v113
    %v462 = vunpack.c.l.b16 %v114
    %v463 = vunpack.c.l.b16 %v115
    %v464 = vunpack.c.l.b16 %v116
    %v465 = vunpack.c.l.b16 %v117
    %v466 = vunpack.c.l.b16 %v118
    %v467 = vunpack.c.l.b16 %v119
    %v468 = vunpack.c.l.b16 %v120
    %v469 = vunpack.c.l.b16 %v121
    %v470 = vunpack.c.l.b16 %v122
    %v471 = vunpack.c.l.b16 %v123
    %v472 = vunpack.c.l.b16 %v124
    %v473 = vunpack.c.l.b16 %v125
    %v474 = vunpack.c.l.b16 %v126
    %v475 = vunpack.c.l.b16 %v127
    %v476 = vunpack.c.l.b16 %v128
    %v477 = vunpack.c.l.b16 %v129
    %v478 = vunpack.c.l.b16 %v130
    %v479 = vunpack.c.l.b16 %v131
    %v480 = vunpack.c.l.b16 %v132
    %v481 = vunpack.c.l.b16 %v133
    %v482 = vunpack.c.l.b16 %v134
    %v483 = vunpack.c.l.b16 %v135
    %v484 = vunpack.c.l.b16 %v136
    %v485 = vunpack.c.l.b16 %v137
    %v486 = vunpack.c.l.b16 %v138
    %v487 = vunpack.c.l.b16 %v139
    %v488 = vunpack.c.l.b16 %v140
    %v489 = vunpack.c.l.b16 %v141
    %v490 = vunpack.c.l.b16 %v142
    %v491 = vunpack.c.l.b16 %v143
    %v492 = vunpack.c.l.b16 %v144
    %v493 = vunpack.c.l.b16 %v145
    %v494 = vunpack.c.l.b16 %v146
    %v495 = vunpack.c.l.b16 %v147
    %v496 = vunpack.c.l.b16 %v148
    %v497 = vunpack.c.l.b16 %v149
    %v498 = vunpack.c.l.b16 %v150
    %v499 = vpack.c.b16 %v428, %v427
    %v500 = vpack.c.b16 %v430, %v429
    %v501 = vpack.c.b16 %v432, %v431
    %v502 = vpack.c.b16 %v434, %v433
    %v503 = vpack.c.b16 %v436, %v435
    %v504 = vpack.c.b16 %v438, %v437
    %v505 = vpack.c.b16 %v440, %v439
    %v506 = vpack.c.b16 %v442, %v441
    %v507 = vpack.c.b16 %v444, %v443
    %v508 = vpack.c.b16 %v446, %v445
    %v509 = vpack.c.b16 %v448, %v447
    %v510 = vpack.c.b16 %v450, %v449
    %v511 = vpack.c.b16 %v452, %v451
    %v512 = vpack.c.b16 %v454, %v453
    %v513 = vpack.c.b16 %v456, %v455
    %v514 = vpack.c.b16 %v458, %v457
    %v515 = vpack.c.b16 %v460, %v459
    %v516 = vpack.c.b16 %v462, %v461
    %v517 = vpack.c.b16 %v464, %v463
    %v518 = vpack.c.b16 %v466, %v465
    %v519 = vpack.c.b16 %v468, %v467
    %v520 = vpack.c.b16 %v470, %v469
    %v521 = vpack.c.b16 %v472, %v471
    %v522 = vpack.c.b16 %v474, %v473
    %v523 = vpack.c.b16 %v476, %v475
    %v524 = vpack.c.b16 %v478, %v477
    %v525 = vpack.c.b16 %v480, %v479
    %v526 = vpack.c.b16 %v482, %v481
    %v527 = vpack.c.b16 %v484, %v483
    %v528 = vpack.c.b16 %v486, %v485
    %v529 = vpack.c.b16 %v488, %v487
    %v530 = vpack.c.b16 %v490, %v489
    %v531 = vpack.c.b16 %v492, %v491
    %v532 = vpack.c.b16 %v494, %v493
    %v533 = vpack.c.b16 %v496, %v495
    %v534 = vpack.c.b16 %v498, %v497
    %vm571 = vcmask 523264
    %v573 = vsel %vm571, %v287, 0
    %v576 = vsel %vm571, %v292, 0
    %v579 = vsel %vm571, %v297, 0
    %v582 = vsel %vm571, %v302, 0
    %v585 = vsel %vm571, %v307, 0
    %v588 = vsel %vm571, %v312, 0
    %v591 = vsel %vm571, %v317, 0
    %v594 = vsel %vm571, %v322, 0
    %596 = vmatpush.bf16.msra.mxu0 %v506
    %597 = vmatpush.bf16.msra.mxu0 %v505
    %598 = vmatpush.bf16.msra.mxu0 %v504
    %599 = vmatpush.bf16.msra.mxu0 %v503
    %600 = vmatpush.bf16.msra.mxu0 %v502
    %601 = vmatpush.bf16.msra.mxu0 %v501
    %602 = vmatpush.bf16.msra.mxu0 %v500
    %603 = vmatpush.bf16.msra.mxu0 %v499
    %604 = vmatmul.bf16.gmra.mxu0 %v283
    %v605 = vpop.f32.mrf.mxu0
    %v606 = vadd.f32 %v153, %v605
    %v607 = vpop.f32.mrf.mxu0
    %v608 = vadd.f32 %v153, %v607
    %609 = vmatmul.bf16.gmra.mxu0 %v288
    %v610 = vpop.f32.mrf.mxu0
    %v611 = vadd.f32 %v153, %v610
    %v612 = vpop.f32.mrf.mxu0
    %v613 = vadd.f32 %v153, %v612
    %614 = vmatmul.bf16.gmra.mxu0 %v293
    %v615 = vpop.f32.mrf.mxu0
    %v616 = vadd.f32 %v153, %v615
    %v617 = vpop.f32.mrf.mxu0
    %v618 = vadd.f32 %v153, %v617
    %619 = vmatmul.bf16.gmra.mxu0 %v298
    %v620 = vpop.f32.mrf.mxu0
    %v621 = vadd.f32 %v153, %v620
    %v622 = vpop.f32.mrf.mxu0
    %v623 = vadd.f32 %v153, %v622
    %624 = vmatmul.bf16.gmra.mxu0 %v303
    %v625 = vpop.f32.mrf.mxu0
    %v626 = vadd.f32 %v153, %v625
    %v627 = vpop.f32.mrf.mxu0
    %v628 = vadd.f32 %v153, %v627
    %629 = vmatmul.bf16.gmra.mxu0 %v308
    %v630 = vpop.f32.mrf.mxu0
    %v631 = vadd.f32 %v153, %v630
    %v632 = vpop.f32.mrf.mxu0
    %v633 = vadd.f32 %v153, %v632
    %634 = vmatmul.bf16.gmra.mxu0 %v313
    %v635 = vpop.f32.mrf.mxu0
    %v636 = vadd.f32 %v153, %v635
    %v637 = vpop.f32.mrf.mxu0
    %v638 = vadd.f32 %v153, %v637
    %639 = vmatmul.bf16.gmra.mxu0 %v318
    %v640 = vpop.f32.mrf.mxu0
    %v641 = vadd.f32 %v153, %v640
    %v642 = vpop.f32.mrf.mxu0
    %v643 = vadd.f32 %v153, %v642
    %644 = vdwg.mxu0
    %645 = vmatpush.bf16.msra.mxu0 %v514
    %646 = vmatpush.bf16.msra.mxu0 %v513
    %647 = vmatpush.bf16.msra.mxu0 %v512
    %648 = vmatpush.bf16.msra.mxu0 %v511
    %649 = vmatpush.bf16.msra.mxu0 %v510
    %650 = vmatpush.bf16.msra.mxu0 %v509
    %651 = vmatpush.bf16.msra.mxu0 %v508
    %652 = vmatpush.bf16.msra.mxu0 %v507
    %653 = vmatmul.bf16.gmra.mxu0 %v284
    %v654 = vpop.f32.mrf.mxu0
    %v655 = vadd.f32 %v606, %v654
    %v656 = vpop.f32.mrf.mxu0
    %v657 = vadd.f32 %v608, %v656
    %658 = vmatmul.bf16.gmra.mxu0 %v289
    %v659 = vpop.f32.mrf.mxu0
    %v660 = vadd.f32 %v611, %v659
    %v661 = vpop.f32.mrf.mxu0
    %v662 = vadd.f32 %v613, %v661
    %663 = vmatmul.bf16.gmra.mxu0 %v294
    %v664 = vpop.f32.mrf.mxu0
    %v665 = vadd.f32 %v616, %v664
    %v666 = vpop.f32.mrf.mxu0
    %v667 = vadd.f32 %v618, %v666
    %668 = vmatmul.bf16.gmra.mxu0 %v299
    %v669 = vpop.f32.mrf.mxu0
    %v670 = vadd.f32 %v621, %v669
    %v671 = vpop.f32.mrf.mxu0
    %v672 = vadd.f32 %v623, %v671
    %673 = vmatmul.bf16.gmra.mxu0 %v304
    %v674 = vpop.f32.mrf.mxu0
    %v675 = vadd.f32 %v626, %v674
    %v676 = vpop.f32.mrf.mxu0
    %v677 = vadd.f32 %v628, %v676
    %678 = vmatmul.bf16.gmra.mxu0 %v309
    %v679 = vpop.f32.mrf.mxu0
    %v680 = vadd.f32 %v631, %v679
    %v681 = vpop.f32.mrf.mxu0
    %v682 = vadd.f32 %v633, %v681
    %683 = vmatmul.bf16.gmra.mxu0 %v314
    %v684 = vpop.f32.mrf.mxu0
    %v685 = vadd.f32 %v636, %v684
    %v686 = vpop.f32.mrf.mxu0
    %v687 = vadd.f32 %v638, %v686
    %688 = vmatmul.bf16.gmra.mxu0 %v319
    %v689 = vpop.f32.mrf.mxu0
    %v690 = vadd.f32 %v641, %v689
    %v691 = vpop.f32.mrf.mxu0
    %v692 = vadd.f32 %v643, %v691
    %693 = vdwg.mxu0
    %694 = vmatpush.bf16.msra.mxu0 %v522
    %695 = vmatpush.bf16.msra.mxu0 %v521
    %696 = vmatpush.bf16.msra.mxu0 %v520
    %697 = vmatpush.bf16.msra.mxu0 %v519
    %698 = vmatpush.bf16.msra.mxu0 %v518
    %699 = vmatpush.bf16.msra.mxu0 %v517
    %700 = vmatpush.bf16.msra.mxu0 %v516
    %701 = vmatpush.bf16.msra.mxu0 %v515
    %702 = vmatmul.bf16.gmra.mxu0 %v285
    %v703 = vpop.f32.mrf.mxu0
    %v704 = vadd.f32 %v655, %v703
    %v705 = vpop.f32.mrf.mxu0
    %v706 = vadd.f32 %v657, %v705
    %707 = vmatmul.bf16.gmra.mxu0 %v290
    %v708 = vpop.f32.mrf.mxu0
    %v709 = vadd.f32 %v660, %v708
    %v710 = vpop.f32.mrf.mxu0
    %v711 = vadd.f32 %v662, %v710
    %712 = vmatmul.bf16.gmra.mxu0 %v295
    %v713 = vpop.f32.mrf.mxu0
    %v714 = vadd.f32 %v665, %v713
    %v715 = vpop.f32.mrf.mxu0
    %v716 = vadd.f32 %v667, %v715
    %717 = vmatmul.bf16.gmra.mxu0 %v300
    %v718 = vpop.f32.mrf.mxu0
    %v719 = vadd.f32 %v670, %v718
    %v720 = vpop.f32.mrf.mxu0
    %v721 = vadd.f32 %v672, %v720
    %722 = vmatmul.bf16.gmra.mxu0 %v305
    %v723 = vpop.f32.mrf.mxu0
    %v724 = vadd.f32 %v675, %v723
    %v725 = vpop.f32.mrf.mxu0
    %v726 = vadd.f32 %v677, %v725
    %727 = vmatmul.bf16.gmra.mxu0 %v310
    %v728 = vpop.f32.mrf.mxu0
    %v729 = vadd.f32 %v680, %v728
    %v730 = vpop.f32.mrf.mxu0
    %v731 = vadd.f32 %v682, %v730
    %732 = vmatmul.bf16.gmra.mxu0 %v315
    %v733 = vpop.f32.mrf.mxu0
    %v734 = vadd.f32 %v685, %v733
    %v735 = vpop.f32.mrf.mxu0
    %v736 = vadd.f32 %v687, %v735
    %737 = vmatmul.bf16.gmra.mxu0 %v320
    %v738 = vpop.f32.mrf.mxu0
    %v739 = vadd.f32 %v690, %v738
    %v740 = vpop.f32.mrf.mxu0
    %v741 = vadd.f32 %v692, %v740
    %742 = vdwg.mxu0
    %743 = vmatpush.bf16.msra.mxu0 %v530
    %744 = vmatpush.bf16.msra.mxu0 %v529
    %745 = vmatpush.bf16.msra.mxu0 %v528
    %746 = vmatpush.bf16.msra.mxu0 %v527
    %747 = vmatpush.bf16.msra.mxu0 %v526
    %748 = vmatpush.bf16.msra.mxu0 %v525
    %749 = vmatpush.bf16.msra.mxu0 %v524
    %750 = vmatpush.bf16.msra.mxu0 %v523
    %751 = vmatmul.bf16.gmra.mxu0 %v286
    %v752 = vpop.f32.mrf.mxu0
    %v753 = vadd.f32 %v704, %v752
    %v754 = vpop.f32.mrf.mxu0
    %v755 = vadd.f32 %v706, %v754
    %756 = vmatmul.bf16.gmra.mxu0 %v291
    %v757 = vpop.f32.mrf.mxu0
    %v758 = vadd.f32 %v709, %v757
    %v759 = vpop.f32.mrf.mxu0
    %v760 = vadd.f32 %v711, %v759
    %761 = vmatmul.bf16.gmra.mxu0 %v296
    %v762 = vpop.f32.mrf.mxu0
    %v763 = vadd.f32 %v714, %v762
    %v764 = vpop.f32.mrf.mxu0
    %v765 = vadd.f32 %v716, %v764
    %766 = vmatmul.bf16.gmra.mxu0 %v301
    %v767 = vpop.f32.mrf.mxu0
    %v768 = vadd.f32 %v719, %v767
    %v769 = vpop.f32.mrf.mxu0
    %v770 = vadd.f32 %v721, %v769
    %771 = vmatmul.bf16.gmra.mxu0 %v306
    %v772 = vpop.f32.mrf.mxu0
    %v773 = vadd.f32 %v724, %v772
    %v774 = vpop.f32.mrf.mxu0
    %v775 = vadd.f32 %v726, %v774
    %776 = vmatmul.bf16.gmra.mxu0 %v311
    %v777 = vpop.f32.mrf.mxu0
    %v778 = vadd.f32 %v729, %v777
    %v779 = vpop.f32.mrf.mxu0
    %v780 = vadd.f32 %v731, %v779
    %781 = vmatmul.bf16.gmra.mxu0 %v316
    %v782 = vpop.f32.mrf.mxu0
    %v783 = vadd.f32 %v734, %v782
    %v784 = vpop.f32.mrf.mxu0
    %v785 = vadd.f32 %v736, %v784
    %786 = vmatmul.bf16.gmra.mxu0 %v321
    %v787 = vpop.f32.mrf.mxu0
    %v788 = vadd.f32 %v739, %v787
    %v789 = vpop.f32.mrf.mxu0
    %v790 = vadd.f32 %v741, %v789
    %791 = vdwg.mxu0
    %792 = vmatpush.bf16.msra.mxu0 0
    %793 = vmatpush.bf16.msra.mxu0 0
    %794 = vmatpush.bf16.msra.mxu0 0
    %795 = vmatpush.bf16.msra.mxu0 0
    %796 = vmatpush.bf16.msra.mxu0 %v534
    %797 = vmatpush.bf16.msra.mxu0 %v533
    %798 = vmatpush.bf16.msra.mxu0 %v532
    %799 = vmatpush.bf16.msra.mxu0 %v531
    %800 = vmatmul.bf16.gmra.mxu0 %v573
    %v801 = vpop.f32.mrf.mxu0
    %v802 = vadd.f32 %v753, %v801
    %v803 = vpop.f32.mrf.mxu0
    %v804 = vadd.f32 %v755, %v803
    %805 = vmatmul.bf16.gmra.mxu0 %v576
    %v806 = vpop.f32.mrf.mxu0
    %v807 = vadd.f32 %v758, %v806
    %v808 = vpop.f32.mrf.mxu0
    %v809 = vadd.f32 %v760, %v808
    %810 = vmatmul.bf16.gmra.mxu0 %v579
    %v811 = vpop.f32.mrf.mxu0
    %v812 = vadd.f32 %v763, %v811
    %v813 = vpop.f32.mrf.mxu0
    %v814 = vadd.f32 %v765, %v813
    %815 = vmatmul.bf16.gmra.mxu0 %v582
    %v816 = vpop.f32.mrf.mxu0
    %v817 = vadd.f32 %v768, %v816
    %v818 = vpop.f32.mrf.mxu0
    %v819 = vadd.f32 %v770, %v818
    %820 = vmatmul.bf16.gmra.mxu0 %v585
    %v821 = vpop.f32.mrf.mxu0
    %v822 = vadd.f32 %v773, %v821
    %v823 = vpop.f32.mrf.mxu0
    %v824 = vadd.f32 %v775, %v823
    %825 = vmatmul.bf16.gmra.mxu0 %v588
    %v826 = vpop.f32.mrf.mxu0
    %v827 = vadd.f32 %v778, %v826
    %v828 = vpop.f32.mrf.mxu0
    %v829 = vadd.f32 %v780, %v828
    %830 = vmatmul.bf16.gmra.mxu0 %v591
    %v831 = vpop.f32.mrf.mxu0
    %v832 = vadd.f32 %v783, %v831
    %v833 = vpop.f32.mrf.mxu0
    %v834 = vadd.f32 %v785, %v833
    %835 = vmatmul.bf16.gmra.mxu0 %v594
    %v836 = vpop.f32.mrf.mxu0
    %v837 = vadd.f32 %v788, %v836
    %v838 = vpop.f32.mrf.mxu0
    %v839 = vadd.f32 %v790, %v838
    %840 = vdwg.mxu0
    %v841 = vsel %vm571, %v802, 0.0
    %v842 = vsel %vm571, %v804, 0.0
    %v843 = vadd.f32 %v841, %v842
    %v844 = vsel %vm571, %v807, 0.0
    %v845 = vadd.f32 %v843, %v844
    %v846 = vsel %vm571, %v809, 0.0
    %v847 = vadd.f32 %v845, %v846
    %v848 = vsel %vm571, %v812, 0.0
    %v849 = vadd.f32 %v847, %v848
    %v850 = vsel %vm571, %v814, 0.0
    %v851 = vadd.f32 %v849, %v850
    %v852 = vsel %vm571, %v817, 0.0
    %v853 = vadd.f32 %v851, %v852
    %v854 = vsel %vm571, %v819, 0.0
    %v855 = vadd.f32 %v853, %v854
    %v856 = vsel %vm571, %v822, 0.0
    %v857 = vadd.f32 %v855, %v856
    %v858 = vsel %vm571, %v824, 0.0
    %v859 = vadd.f32 %v857, %v858
    %v860 = vsel %vm571, %v827, 0.0
    %v861 = vadd.f32 %v859, %v860
    %v862 = vsel %vm571, %v829, 0.0
    %v863 = vadd.f32 %v861, %v862
    %v864 = vsel %vm571, %v832, 0.0
    %v865 = vadd.f32 %v863, %v864
    %v866 = vsel %vm571, %v834, 0.0
    %v867 = vadd.f32 %v865, %v866
    %v868 = vsel %vm571, %v837, 0.0
    %v869 = vadd.f32 %v867, %v868
    %v870 = vsel %vm571, %v839, 0.0
    %v871 = vadd.f32 %v869, %v870
    %v872 = vrot.slane %v871, 4
    %v873 = vadd.f32 %v871, %v872
    %v874 = vrot.slane %v873, 2
    %v875 = vadd.f32 %v873, %v874
    %v876 = vrot.slane %v875, 1
    %v877 = vadd.f32 %v875, %v876
    %v878 = vmul.f32 %v877, 0.0078125
    %v879 = vmul.f32 %v802, %v802
    %v880 = vmul.f32 %v804, %v804
    %v881 = vmul.f32 %v807, %v807
    %v882 = vmul.f32 %v809, %v809
    %v883 = vmul.f32 %v812, %v812
    %v884 = vmul.f32 %v814, %v814
    %v885 = vmul.f32 %v817, %v817
    %v886 = vmul.f32 %v819, %v819
    %v887 = vmul.f32 %v822, %v822
    %v888 = vmul.f32 %v824, %v824
    %v889 = vmul.f32 %v827, %v827
    %v890 = vmul.f32 %v829, %v829
    %v891 = vmul.f32 %v832, %v832
    %v892 = vmul.f32 %v834, %v834
    %v893 = vmul.f32 %v837, %v837
    %v894 = vmul.f32 %v839, %v839
    %v895 = vsel %vm571, %v879, 0.0
    %v896 = vsel %vm571, %v880, 0.0
    %v897 = vadd.f32 %v895, %v896
    %v898 = vsel %vm571, %v881, 0.0
    %v899 = vadd.f32 %v897, %v898
    %v900 = vsel %vm571, %v882, 0.0
    %v901 = vadd.f32 %v899, %v900
    %v902 = vsel %vm571, %v883, 0.0
    %v903 = vadd.f32 %v901, %v902
    %v904 = vsel %vm571, %v884, 0.0
    %v905 = vadd.f32 %v903, %v904
    %v906 = vsel %vm571, %v885, 0.0
    %v907 = vadd.f32 %v905, %v906
    %v908 = vsel %vm571, %v886, 0.0
    %v909 = vadd.f32 %v907, %v908
    %v910 = vsel %vm571, %v887, 0.0
    %v911 = vadd.f32 %v909, %v910
    %v912 = vsel %vm571, %v888, 0.0
    %v913 = vadd.f32 %v911, %v912
    %v914 = vsel %vm571, %v889, 0.0
    %v915 = vadd.f32 %v913, %v914
    %v916 = vsel %vm571, %v890, 0.0
    %v917 = vadd.f32 %v915, %v916
    %v918 = vsel %vm571, %v891, 0.0
    %v919 = vadd.f32 %v917, %v918
    %v920 = vsel %vm571, %v892, 0.0
    %v921 = vadd.f32 %v919, %v920
    %v922 = vsel %vm571, %v893, 0.0
    %v923 = vadd.f32 %v921, %v922
    %v924 = vsel %vm571, %v894, 0.0
    %v925 = vadd.f32 %v923, %v924
    %v926 = vrot.slane %v925, 4
    %v927 = vadd.f32 %v925, %v926
    %v928 = vrot.slane %v927, 2
    %v929 = vadd.f32 %v927, %v928
    %v930 = vrot.slane %v929, 1
    %v931 = vadd.f32 %v929, %v930
    %v932 = vmul.f32 %v931, 0.0078125
    %v933 = vmul.f32 %v878, %v878
    %v934 = vsub.f32 %v932, %v933
    %v935 = vmax.f32 %v934, 0.0
    %v936 = vsub.f32 %v802, %v878
    %v937 = vsub.f32 %v804, %v878
    %v938 = vsub.f32 %v807, %v878
    %v939 = vsub.f32 %v809, %v878
    %v940 = vsub.f32 %v812, %v878
    %v941 = vsub.f32 %v814, %v878
    %v942 = vsub.f32 %v817, %v878
    %v943 = vsub.f32 %v819, %v878
    %v944 = vsub.f32 %v822, %v878
    %v945 = vsub.f32 %v824, %v878
    %v946 = vsub.f32 %v827, %v878
    %v947 = vsub.f32 %v829, %v878
    %v948 = vsub.f32 %v832, %v878
    %v949 = vsub.f32 %v834, %v878
    %v950 = vsub.f32 %v837, %v878
    %v951 = vsub.f32 %v839, %v878
    %v952 = vadd.f32 %v935, 1e-05
    %v953 = vrsqrt.pop %v952
    %v954 = vmul.f32 %v953, %v952
    %v955 = vmul.f32 %v954, %v953
    %v956 = vmul.f32 0.5, %v955
    %v957 = vsub.f32 1.5, %v956
    %v958 = vmul.f32 %v953, %v957
    %vm959 = vweird.f32 %v952
    %vm960 = vweird.f32 %v953
    %vm961 = vmor %vm959, %vm960
    %v962 = vsel %vm961, %v953, %v958
    %v963 = vmul.f32 %v936, %v962
    %v964 = vmul.f32 %v937, %v962
    %v965 = vmul.f32 %v938, %v962
    %v966 = vmul.f32 %v939, %v962
    %v967 = vmul.f32 %v940, %v962
    %v968 = vmul.f32 %v941, %v962
    %v969 = vmul.f32 %v942, %v962
    %v970 = vmul.f32 %v943, %v962
    %v971 = vmul.f32 %v944, %v962
    %v972 = vmul.f32 %v945, %v962
    %v973 = vmul.f32 %v946, %v962
    %v974 = vmul.f32 %v947, %v962
    %v975 = vmul.f32 %v948, %v962
    %v976 = vmul.f32 %v949, %v962
    %v977 = vmul.f32 %v950, %v962
    %v978 = vmul.f32 %v951, %v962
    %v979 = vmax.f32 %v963, 0.0
    %v980 = vmax.f32 %v964, 0.0
    %v981 = vmax.f32 %v965, 0.0
    %v982 = vmax.f32 %v966, 0.0
    %v983 = vmax.f32 %v967, 0.0
    %v984 = vmax.f32 %v968, 0.0
    %v985 = vmax.f32 %v969, 0.0
    %v986 = vmax.f32 %v970, 0.0
    %v987 = vmax.f32 %v971, 0.0
    %v988 = vmax.f32 %v972, 0.0
    %v989 = vmax.f32 %v973, 0.0
    %v990 = vmax.f32 %v974, 0.0
    %v991 = vmax.f32 %v975, 0.0
    %v992 = vmax.f32 %v976, 0.0
    %v993 = vmax.f32 %v977, 0.0
    %v994 = vmax.f32 %v978, 0.0
    %v995 = vld [vmem:[%s3] sm:$0xff]
    %v996 = vld [vmem:[%s3 + $0x8] sm:$0xff]
    %v997 = vld [vmem:[%s3 + $0x10] sm:$0xff]
    %v998 = vld [vmem:[%s3 + $0x18] sm:$0xff]
    %v999 = vld [vmem:[%s3 + $0x20] sm:$0xff]
    %v1000 = vld [vmem:[%s3 + $0x28] sm:$0xff]
    %v1001 = vld [vmem:[%s3 + $0x30] sm:$0xff]
    %v1002 = vld [vmem:[%s3 + $0x38] sm:$0xff]
    %v1003 = vld [vmem:[%s3 + $0x40] sm:$0xff]
    %v1004 = vld [vmem:[%s3 + $0x48] sm:$0xff]
    %v1005 = vld [vmem:[%s3 + $0x50] sm:$0xff]
    %v1006 = vld [vmem:[%s3 + $0x58] sm:$0xff]
    %v1007 = vld [vmem:[%s3 + $0x60] sm:$0xff]
    %v1008 = vld [vmem:[%s3 + $0x68] sm:$0xff]
    %v1009 = vld [vmem:[%s3 + $0x70] sm:$0xff]
    %v1010 = vld [vmem:[%s3 + $0x78] sm:$0xff]
    %1011 = vmatpush.msra.mxu0 %v994
    %1012 = vmatpush.msra.mxu0 %v993
    %1013 = vmatpush.msra.mxu0 %v992
    %1014 = vmatpush.msra.mxu0 %v991
    %1015 = vmatpush.msra.mxu0 %v990
    %1016 = vmatpush.msra.mxu0 %v989
    %1017 = vmatpush.msra.mxu0 %v988
    %1018 = vmatpush.msra.mxu0 %v987
    %1019 = vmatpush.msra.mxu0 %v986
    %1020 = vmatpush.msra.mxu0 %v985
    %1021 = vmatpush.msra.mxu0 %v984
    %1022 = vmatpush.msra.mxu0 %v983
    %1023 = vmatpush.msra.mxu0 %v982
    %1024 = vmatpush.msra.mxu0 %v981
    %1025 = vmatpush.msra.mxu0 %v980
    %1026 = vmatpush.msra.mxu0 %v979
    %1027 = vmatmul.f32.gmra.mxu0 %v995
    %v1028 = vpop.f32.mrf.mxu0
    %v1029 = vadd.f32 0.0, %v1028
    %1030 = vmatmul.f32.gmra.mxu0 %v996
    %v1031 = vpop.f32.mrf.mxu0
    %v1032 = vadd.f32 0.0, %v1031
    %1033 = vmatmul.f32.gmra.mxu0 %v997
    %v1034 = vpop.f32.mrf.mxu0
    %v1035 = vadd.f32 0.0, %v1034
    %1036 = vmatmul.f32.gmra.mxu0 %v998
    %v1037 = vpop.f32.mrf.mxu0
    %v1038 = vadd.f32 0.0, %v1037
    %1039 = vmatmul.f32.gmra.mxu0 %v999
    %v1040 = vpop.f32.mrf.mxu0
    %v1041 = vadd.f32 0.0, %v1040
    %1042 = vmatmul.f32.gmra.mxu0 %v1000
    %v1043 = vpop.f32.mrf.mxu0
    %v1044 = vadd.f32 0.0, %v1043
    %1045 = vmatmul.f32.gmra.mxu0 %v1001
    %v1046 = vpop.f32.mrf.mxu0
    %v1047 = vadd.f32 0.0, %v1046
    %1048 = vmatmul.f32.gmra.mxu0 %v1002
    %v1049 = vpop.f32.mrf.mxu0
    %v1050 = vadd.f32 0.0, %v1049
    %1051 = vmatmul.f32.gmra.mxu0 %v1003
    %v1052 = vpop.f32.mrf.mxu0
    %v1053 = vadd.f32 0.0, %v1052
    %1054 = vmatmul.f32.gmra.mxu0 %v1004
    %v1055 = vpop.f32.mrf.mxu0
    %v1056 = vadd.f32 0.0, %v1055
    %1057 = vmatmul.f32.gmra.mxu0 %v1005
    %v1058 = vpop.f32.mrf.mxu0
    %v1059 = vadd.f32 0.0, %v1058
    %1060 = vmatmul.f32.gmra.mxu0 %v1006
    %v1061 = vpop.f32.mrf.mxu0
    %v1062 = vadd.f32 0.0, %v1061
    %1063 = vmatmul.f32.gmra.mxu0 %v1007
    %v1064 = vpop.f32.mrf.mxu0
    %v1065 = vadd.f32 0.0, %v1064
    %1066 = vmatmul.f32.gmra.mxu0 %v1008
    %v1067 = vpop.f32.mrf.mxu0
    %v1068 = vadd.f32 0.0, %v1067
    %1069 = vmatmul.f32.gmra.mxu0 %v1009
    %v1070 = vpop.f32.mrf.mxu0
    %v1071 = vadd.f32 0.0, %v1070
    %1072 = vmatmul.f32.gmra.mxu0 %v1010
    %v1073 = vpop.f32.mrf.mxu0
    %v1074 = vadd.f32 0.0, %v1073
    %1075 = vdwg.mxu0
    %1077 = vrot.lane.b32.xlu0 %v1032, 64
    %v1078 = vpop.permute.xlu0 %1077
    %1081 = vrot.lane.b32.xlu0 %v1038, 64
    %v1082 = vpop.permute.xlu0 %1081
    %1085 = vrot.lane.b32.xlu0 %v1044, 64
    %v1086 = vpop.permute.xlu0 %1085
    %1089 = vrot.lane.b32.xlu0 %v1050, 64
    %v1090 = vpop.permute.xlu0 %1089
    %1093 = vrot.lane.b32.xlu0 %v1056, 64
    %v1094 = vpop.permute.xlu0 %1093
    %1097 = vrot.lane.b32.xlu0 %v1062, 64
    %v1098 = vpop.permute.xlu0 %1097
    %1101 = vrot.lane.b32.xlu0 %v1068, 64
    %v1102 = vpop.permute.xlu0 %1101
    %1105 = vrot.lane.b32.xlu0 %v1074, 64
    %v1106 = vpop.permute.xlu0 %1105
    %v1108 = vsel %vm571, %v1029, %v1078
    %v1109 = vsel %vm571, %v1035, %v1082
    %v1110 = vsel %vm571, %v1041, %v1086
    %v1111 = vsel %vm571, %v1047, %v1090
    %v1112 = vsel %vm571, %v1053, %v1094
    %v1113 = vsel %vm571, %v1059, %v1098
    %v1114 = vsel %vm571, %v1065, %v1102
    %v1115 = vsel %vm571, %v1071, %v1106
    %v1116 = vpack.c.bf16 %v1108, %v1108
    %v1117 = vpack.c.bf16 %v1109, %v1109
    %v1118 = vpack.c.bf16 %v1110, %v1110
    %v1119 = vpack.c.bf16 %v1111, %v1111
    %v1120 = vpack.c.bf16 %v1112, %v1112
    %v1121 = vpack.c.bf16 %v1113, %v1113
    %v1122 = vpack.c.bf16 %v1114, %v1114
    %v1123 = vpack.c.bf16 %v1115, %v1115
    %v1124 = vld [vmem:[%s4] sm:$0xf]
    %v1125 = vld [vmem:[%s4 + $0x4] sm:$0xf]
    %v1126 = vld [vmem:[%s4 + $0x8] sm:$0xf]
    %v1127 = vld [vmem:[%s4 + $0xc] sm:$0xf]
    %v1128 = vld [vmem:[%s4 + $0x10] sm:$0xf]
    %v1129 = vld [vmem:[%s4 + $0x14] sm:$0xf]
    %v1130 = vld [vmem:[%s4 + $0x18] sm:$0xf]
    %v1131 = vld [vmem:[%s4 + $0x1c] sm:$0xf]
    %v1132 = vld [vmem:[%s4 + $0x20] sm:$0xf]
    %v1133 = vld [vmem:[%s4 + $0x24] sm:$0xf]
    %v1134 = vld [vmem:[%s4 + $0x28] sm:$0xf]
    %v1135 = vld [vmem:[%s4 + $0x2c] sm:$0xf]
    %v1136 = vld [vmem:[%s4 + $0x30] sm:$0xf]
    %v1137 = vld [vmem:[%s4 + $0x34] sm:$0xf]
    %v1138 = vld [vmem:[%s4 + $0x38] sm:$0xf]
    %v1139 = vld [vmem:[%s4 + $0x3c] sm:$0xf]
    %v1140 = vld [vmem:[%s4 + $0x40] sm:$0xf]
    %v1141 = vld [vmem:[%s4 + $0x44] sm:$0xf]
    %v1142 = vld [vmem:[%s4 + $0x48] sm:$0xf]
    %v1143 = vld [vmem:[%s4 + $0x4c] sm:$0xf]
    %v1144 = vld [vmem:[%s4 + $0x50] sm:$0xf]
    %v1145 = vld [vmem:[%s4 + $0x54] sm:$0xf]
    %v1146 = vld [vmem:[%s4 + $0x58] sm:$0xf]
    %v1147 = vld [vmem:[%s4 + $0x5c] sm:$0xf]
    %v1148 = vld [vmem:[%s4 + $0x60] sm:$0xf]
    %v1149 = vld [vmem:[%s4 + $0x64] sm:$0xf]
    %v1150 = vld [vmem:[%s4 + $0x68] sm:$0xf]
    %v1151 = vld [vmem:[%s4 + $0x6c] sm:$0xf]
    %v1152 = vld [vmem:[%s4 + $0x70] sm:$0xf]
    %v1153 = vld [vmem:[%s4 + $0x74] sm:$0xf]
    %v1154 = vld [vmem:[%s4 + $0x78] sm:$0xf]
    %v1155 = vld [vmem:[%s4 + $0x7c] sm:$0xf]
    %v1156 = vld [vmem:[%s4 + $0x80] sm:$0xf]
    %v1157 = vld [vmem:[%s4 + $0x84] sm:$0xf]
    %v1158 = vld [vmem:[%s4 + $0x88] sm:$0xf]
    %v1159 = vld [vmem:[%s4 + $0x8c] sm:$0xf]
    %v1160 = vld [vmem:[%s4 + $0x90] sm:$0xf]
    %v1161 = vld [vmem:[%s4 + $0x94] sm:$0xf]
    %v1162 = vld [vmem:[%s4 + $0x98] sm:$0xf]
    %v1163 = vld [vmem:[%s4 + $0x9c] sm:$0xf]
    %v1164 = vld [vmem:[%s4 + $0xa0] sm:$0xf]
    %v1165 = vld [vmem:[%s4 + $0xa4] sm:$0xf]
    %v1166 = vld [vmem:[%s4 + $0xa8] sm:$0xf]
    %v1167 = vld [vmem:[%s4 + $0xac] sm:$0xf]
    %v1168 = vld [vmem:[%s4 + $0xb0] sm:$0xf]
    %v1169 = vld [vmem:[%s4 + $0xb4] sm:$0xf]
    %v1170 = vld [vmem:[%s4 + $0xb8] sm:$0xf]
    %v1171 = vld [vmem:[%s4 + $0xbc] sm:$0xf]
    %v1172 = vld [vmem:[%s4 + $0xc0] sm:$0xf]
    %v1173 = vld [vmem:[%s4 + $0xc4] sm:$0xf]
    %v1174 = vld [vmem:[%s4 + $0xc8] sm:$0xf]
    %v1175 = vld [vmem:[%s4 + $0xcc] sm:$0xf]
    %v1176 = vld [vmem:[%s4 + $0xd0] sm:$0xf]
    %v1177 = vld [vmem:[%s4 + $0xd4] sm:$0xf]
    %v1178 = vld [vmem:[%s4 + $0xd8] sm:$0xf]
    %v1179 = vld [vmem:[%s4 + $0xdc] sm:$0xf]
    %v1180 = vld [vmem:[%s4 + $0xe0] sm:$0xf]
    %v1181 = vld [vmem:[%s4 + $0xe4] sm:$0xf]
    %v1182 = vld [vmem:[%s4 + $0xe8] sm:$0xf]
    %v1183 = vld [vmem:[%s4 + $0xec] sm:$0xf]
    %v1184 = vld [vmem:[%s4 + $0xf0] sm:$0xf]
    %v1185 = vld [vmem:[%s4 + $0xf4] sm:$0xf]
    %v1186 = vld [vmem:[%s4 + $0xf8] sm:$0xf]
    %v1187 = vld [vmem:[%s4 + $0xfc] sm:$0xf]
    %v1188 = vld [vmem:[%s4 + $0x100] sm:$0xf]
    %v1189 = vld [vmem:[%s4 + $0x104] sm:$0xf]
    %v1190 = vld [vmem:[%s4 + $0x108] sm:$0xf]
    %v1191 = vld [vmem:[%s4 + $0x10c] sm:$0xf]
    %v1192 = vld [vmem:[%s4 + $0x110] sm:$0xf]
    %v1193 = vld [vmem:[%s4 + $0x114] sm:$0xf]
    %v1194 = vld [vmem:[%s4 + $0x118] sm:$0xf]
    %v1195 = vld [vmem:[%s4 + $0x11c] sm:$0xf]
    %v1196 = vld [vmem:[%s4 + $0x120] sm:$0xf]
    %v1197 = vld [vmem:[%s4 + $0x124] sm:$0xf]
    %v1198 = vld [vmem:[%s4 + $0x128] sm:$0xf]
    %v1199 = vld [vmem:[%s4 + $0x12c] sm:$0xf]
    %v1200 = vld [vmem:[%s4 + $0x130] sm:$0xf]
    %v1201 = vld [vmem:[%s4 + $0x134] sm:$0xf]
    %v1202 = vld [vmem:[%s4 + $0x138] sm:$0xf]
    %v1203 = vld [vmem:[%s4 + $0x13c] sm:$0xf]
    %v1204 = vld [vmem:[%s4 + $0x140] sm:$0xf]
    %v1205 = vld [vmem:[%s4 + $0x144] sm:$0xf]
    %v1206 = vld [vmem:[%s4 + $0x148] sm:$0xf]
    %v1207 = vld [vmem:[%s4 + $0x14c] sm:$0xf]
    %v1208 = vld [vmem:[%s4 + $0x150] sm:$0xf]
    %v1209 = vld [vmem:[%s4 + $0x154] sm:$0xf]
    %v1210 = vld [vmem:[%s4 + $0x158] sm:$0xf]
    %v1211 = vld [vmem:[%s4 + $0x15c] sm:$0xf]
    %v1212 = vld [vmem:[%s4 + $0x160] sm:$0xf]
    %v1213 = vld [vmem:[%s4 + $0x164] sm:$0xf]
    %v1214 = vld [vmem:[%s4 + $0x168] sm:$0xf]
    %v1215 = vld [vmem:[%s4 + $0x16c] sm:$0xf]
    %v1216 = vld [vmem:[%s4 + $0x170] sm:$0xf]
    %v1217 = vld [vmem:[%s4 + $0x174] sm:$0xf]
    %v1218 = vld [vmem:[%s4 + $0x178] sm:$0xf]
    %v1219 = vld [vmem:[%s4 + $0x17c] sm:$0xf]
    %v1220 = vld [vmem:[%s4 + $0x180] sm:$0xf]
    %v1221 = vld [vmem:[%s4 + $0x184] sm:$0xf]
    %v1222 = vld [vmem:[%s4 + $0x188] sm:$0xf]
    %v1223 = vld [vmem:[%s4 + $0x18c] sm:$0xf]
    %v1224 = vld [vmem:[%s4 + $0x190] sm:$0xf]
    %v1225 = vld [vmem:[%s4 + $0x194] sm:$0xf]
    %v1226 = vld [vmem:[%s4 + $0x198] sm:$0xf]
    %v1227 = vld [vmem:[%s4 + $0x19c] sm:$0xf]
    %v1228 = vld [vmem:[%s4 + $0x1a0] sm:$0xf]
    %v1229 = vld [vmem:[%s4 + $0x1a4] sm:$0xf]
    %v1230 = vld [vmem:[%s4 + $0x1a8] sm:$0xf]
    %v1231 = vld [vmem:[%s4 + $0x1ac] sm:$0xf]
    %v1232 = vld [vmem:[%s4 + $0x1b0] sm:$0xf]
    %v1233 = vld [vmem:[%s4 + $0x1b4] sm:$0xf]
    %v1234 = vld [vmem:[%s4 + $0x1b8] sm:$0xf]
    %v1235 = vld [vmem:[%s4 + $0x1bc] sm:$0xf]
    %v1236 = vld [vmem:[%s4 + $0x1c0] sm:$0xf]
    %v1237 = vld [vmem:[%s4 + $0x1c4] sm:$0xf]
    %v1238 = vld [vmem:[%s4 + $0x1c8] sm:$0xf]
    %v1239 = vld [vmem:[%s4 + $0x1cc] sm:$0xf]
    %v1240 = vld [vmem:[%s4 + $0x1d0] sm:$0xf]
    %v1241 = vld [vmem:[%s4 + $0x1d4] sm:$0xf]
    %v1242 = vld [vmem:[%s4 + $0x1d8] sm:$0xf]
    %v1243 = vld [vmem:[%s4 + $0x1dc] sm:$0xf]
    %v1244 = vld [vmem:[%s4 + $0x1e0] sm:$0xf]
    %v1245 = vld [vmem:[%s4 + $0x1e4] sm:$0xf]
    %v1246 = vld [vmem:[%s4 + $0x1e8] sm:$0xf]
    %v1247 = vld [vmem:[%s4 + $0x1ec] sm:$0xf]
    %v1248 = vld [vmem:[%s4 + $0x1f0] sm:$0xf]
    %v1249 = vld [vmem:[%s4 + $0x1f4] sm:$0xf]
    %v1250 = vld [vmem:[%s4 + $0x1f8] sm:$0xf]
    %v1251 = vld [vmem:[%s4 + $0x1fc] sm:$0xf]
    %v1252 = vld [vmem:[%s5] sm:$0x1]
    %v1254 = vperm.slane %v1252, 0
    %v1384 = vunpack.c.l.b16 %v1124
    %v1385 = vunpack.c.l.b16 %v1125
    %v1386 = vunpack.c.l.b16 %v1126
    %v1387 = vunpack.c.l.b16 %v1127
    %v1388 = vunpack.c.l.b16 %v1128
    %v1389 = vunpack.c.l.b16 %v1129
    %v1390 = vunpack.c.l.b16 %v1130
    %v1391 = vunpack.c.l.b16 %v1131
    %v1392 = vunpack.c.l.b16 %v1132
    %v1393 = vunpack.c.l.b16 %v1133
    %v1394 = vunpack.c.l.b16 %v1134
    %v1395 = vunpack.c.l.b16 %v1135
    %v1396 = vunpack.c.l.b16 %v1136
    %v1397 = vunpack.c.l.b16 %v1137
    %v1398 = vunpack.c.l.b16 %v1138
    %v1399 = vunpack.c.l.b16 %v1139
    %v1400 = vunpack.c.l.b16 %v1140
    %v1401 = vunpack.c.l.b16 %v1141
    %v1402 = vunpack.c.l.b16 %v1142
    %v1403 = vunpack.c.l.b16 %v1143
    %v1404 = vunpack.c.l.b16 %v1144
    %v1405 = vunpack.c.l.b16 %v1145
    %v1406 = vunpack.c.l.b16 %v1146
    %v1407 = vunpack.c.l.b16 %v1147
    %v1408 = vunpack.c.l.b16 %v1148
    %v1409 = vunpack.c.l.b16 %v1149
    %v1410 = vunpack.c.l.b16 %v1150
    %v1411 = vunpack.c.l.b16 %v1151
    %v1412 = vunpack.c.l.b16 %v1152
    %v1413 = vunpack.c.l.b16 %v1153
    %v1414 = vunpack.c.l.b16 %v1154
    %v1415 = vunpack.c.l.b16 %v1155
    %v1416 = vunpack.c.l.b16 %v1156
    %v1417 = vunpack.c.l.b16 %v1157
    %v1418 = vunpack.c.l.b16 %v1158
    %v1419 = vunpack.c.l.b16 %v1159
    %v1420 = vunpack.c.l.b16 %v1160
    %v1421 = vunpack.c.l.b16 %v1161
    %v1422 = vunpack.c.l.b16 %v1162
    %v1423 = vunpack.c.l.b16 %v1163
    %v1424 = vunpack.c.l.b16 %v1164
    %v1425 = vunpack.c.l.b16 %v1165
    %v1426 = vunpack.c.l.b16 %v1166
    %v1427 = vunpack.c.l.b16 %v1167
    %v1428 = vunpack.c.l.b16 %v1168
    %v1429 = vunpack.c.l.b16 %v1169
    %v1430 = vunpack.c.l.b16 %v1170
    %v1431 = vunpack.c.l.b16 %v1171
    %v1432 = vunpack.c.l.b16 %v1172
    %v1433 = vunpack.c.l.b16 %v1173
    %v1434 = vunpack.c.l.b16 %v1174
    %v1435 = vunpack.c.l.b16 %v1175
    %v1436 = vunpack.c.l.b16 %v1176
    %v1437 = vunpack.c.l.b16 %v1177
    %v1438 = vunpack.c.l.b16 %v1178
    %v1439 = vunpack.c.l.b16 %v1179
    %v1440 = vunpack.c.l.b16 %v1180
    %v1441 = vunpack.c.l.b16 %v1181
    %v1442 = vunpack.c.l.b16 %v1182
    %v1443 = vunpack.c.l.b16 %v1183
    %v1444 = vunpack.c.l.b16 %v1184
    %v1445 = vunpack.c.l.b16 %v1185
    %v1446 = vunpack.c.l.b16 %v1186
    %v1447 = vunpack.c.l.b16 %v1187
    %v1448 = vunpack.c.l.b16 %v1188
    %v1449 = vunpack.c.l.b16 %v1189
    %v1450 = vunpack.c.l.b16 %v1190
    %v1451 = vunpack.c.l.b16 %v1191
    %v1452 = vunpack.c.l.b16 %v1192
    %v1453 = vunpack.c.l.b16 %v1193
    %v1454 = vunpack.c.l.b16 %v1194
    %v1455 = vunpack.c.l.b16 %v1195
    %v1456 = vunpack.c.l.b16 %v1196
    %v1457 = vunpack.c.l.b16 %v1197
    %v1458 = vunpack.c.l.b16 %v1198
    %v1459 = vunpack.c.l.b16 %v1199
    %v1460 = vunpack.c.l.b16 %v1200
    %v1461 = vunpack.c.l.b16 %v1201
    %v1462 = vunpack.c.l.b16 %v1202
    %v1463 = vunpack.c.l.b16 %v1203
    %v1464 = vunpack.c.l.b16 %v1204
    %v1465 = vunpack.c.l.b16 %v1205
    %v1466 = vunpack.c.l.b16 %v1206
    %v1467 = vunpack.c.l.b16 %v1207
    %v1468 = vunpack.c.l.b16 %v1208
    %v1469 = vunpack.c.l.b16 %v1209
    %v1470 = vunpack.c.l.b16 %v1210
    %v1471 = vunpack.c.l.b16 %v1211
    %v1472 = vunpack.c.l.b16 %v1212
    %v1473 = vunpack.c.l.b16 %v1213
    %v1474 = vunpack.c.l.b16 %v1214
    %v1475 = vunpack.c.l.b16 %v1215
    %v1476 = vunpack.c.l.b16 %v1216
    %v1477 = vunpack.c.l.b16 %v1217
    %v1478 = vunpack.c.l.b16 %v1218
    %v1479 = vunpack.c.l.b16 %v1219
    %v1480 = vunpack.c.l.b16 %v1220
    %v1481 = vunpack.c.l.b16 %v1221
    %v1482 = vunpack.c.l.b16 %v1222
    %v1483 = vunpack.c.l.b16 %v1223
    %v1484 = vunpack.c.l.b16 %v1224
    %v1485 = vunpack.c.l.b16 %v1225
    %v1486 = vunpack.c.l.b16 %v1226
    %v1487 = vunpack.c.l.b16 %v1227
    %v1488 = vunpack.c.l.b16 %v1228
    %v1489 = vunpack.c.l.b16 %v1229
    %v1490 = vunpack.c.l.b16 %v1230
    %v1491 = vunpack.c.l.b16 %v1231
    %v1492 = vunpack.c.l.b16 %v1232
    %v1493 = vunpack.c.l.b16 %v1233
    %v1494 = vunpack.c.l.b16 %v1234
    %v1495 = vunpack.c.l.b16 %v1235
    %v1496 = vunpack.c.l.b16 %v1236
    %v1497 = vunpack.c.l.b16 %v1237
    %v1498 = vunpack.c.l.b16 %v1238
    %v1499 = vunpack.c.l.b16 %v1239
    %v1500 = vunpack.c.l.b16 %v1240
    %v1501 = vunpack.c.l.b16 %v1241
    %v1502 = vunpack.c.l.b16 %v1242
    %v1503 = vunpack.c.l.b16 %v1243
    %v1504 = vunpack.c.l.b16 %v1244
    %v1505 = vunpack.c.l.b16 %v1245
    %v1506 = vunpack.c.l.b16 %v1246
    %v1507 = vunpack.c.l.b16 %v1247
    %v1508 = vunpack.c.l.b16 %v1248
    %v1509 = vunpack.c.l.b16 %v1249
    %v1510 = vunpack.c.l.b16 %v1250
    %v1511 = vunpack.c.l.b16 %v1251
    %v1512 = vpack.c.b16 %v1385, %v1384
    %v1513 = vpack.c.b16 %v1387, %v1386
    %v1514 = vpack.c.b16 %v1389, %v1388
    %v1515 = vpack.c.b16 %v1391, %v1390
    %v1516 = vpack.c.b16 %v1393, %v1392
    %v1517 = vpack.c.b16 %v1395, %v1394
    %v1518 = vpack.c.b16 %v1397, %v1396
    %v1519 = vpack.c.b16 %v1399, %v1398
    %v1520 = vpack.c.b16 %v1401, %v1400
    %v1521 = vpack.c.b16 %v1403, %v1402
    %v1522 = vpack.c.b16 %v1405, %v1404
    %v1523 = vpack.c.b16 %v1407, %v1406
    %v1524 = vpack.c.b16 %v1409, %v1408
    %v1525 = vpack.c.b16 %v1411, %v1410
    %v1526 = vpack.c.b16 %v1413, %v1412
    %v1527 = vpack.c.b16 %v1415, %v1414
    %v1528 = vpack.c.b16 %v1417, %v1416
    %v1529 = vpack.c.b16 %v1419, %v1418
    %v1530 = vpack.c.b16 %v1421, %v1420
    %v1531 = vpack.c.b16 %v1423, %v1422
    %v1532 = vpack.c.b16 %v1425, %v1424
    %v1533 = vpack.c.b16 %v1427, %v1426
    %v1534 = vpack.c.b16 %v1429, %v1428
    %v1535 = vpack.c.b16 %v1431, %v1430
    %v1536 = vpack.c.b16 %v1433, %v1432
    %v1537 = vpack.c.b16 %v1435, %v1434
    %v1538 = vpack.c.b16 %v1437, %v1436
    %v1539 = vpack.c.b16 %v1439, %v1438
    %v1540 = vpack.c.b16 %v1441, %v1440
    %v1541 = vpack.c.b16 %v1443, %v1442
    %v1542 = vpack.c.b16 %v1445, %v1444
    %v1543 = vpack.c.b16 %v1447, %v1446
    %v1544 = vpack.c.b16 %v1449, %v1448
    %v1545 = vpack.c.b16 %v1451, %v1450
    %v1546 = vpack.c.b16 %v1453, %v1452
    %v1547 = vpack.c.b16 %v1455, %v1454
    %v1548 = vpack.c.b16 %v1457, %v1456
    %v1549 = vpack.c.b16 %v1459, %v1458
    %v1550 = vpack.c.b16 %v1461, %v1460
    %v1551 = vpack.c.b16 %v1463, %v1462
    %v1552 = vpack.c.b16 %v1465, %v1464
    %v1553 = vpack.c.b16 %v1467, %v1466
    %v1554 = vpack.c.b16 %v1469, %v1468
    %v1555 = vpack.c.b16 %v1471, %v1470
    %v1556 = vpack.c.b16 %v1473, %v1472
    %v1557 = vpack.c.b16 %v1475, %v1474
    %v1558 = vpack.c.b16 %v1477, %v1476
    %v1559 = vpack.c.b16 %v1479, %v1478
    %v1560 = vpack.c.b16 %v1481, %v1480
    %v1561 = vpack.c.b16 %v1483, %v1482
    %v1562 = vpack.c.b16 %v1485, %v1484
    %v1563 = vpack.c.b16 %v1487, %v1486
    %v1564 = vpack.c.b16 %v1489, %v1488
    %v1565 = vpack.c.b16 %v1491, %v1490
    %v1566 = vpack.c.b16 %v1493, %v1492
    %v1567 = vpack.c.b16 %v1495, %v1494
    %v1568 = vpack.c.b16 %v1497, %v1496
    %v1569 = vpack.c.b16 %v1499, %v1498
    %v1570 = vpack.c.b16 %v1501, %v1500
    %v1571 = vpack.c.b16 %v1503, %v1502
    %v1572 = vpack.c.b16 %v1505, %v1504
    %v1573 = vpack.c.b16 %v1507, %v1506
    %v1574 = vpack.c.b16 %v1509, %v1508
    %v1575 = vpack.c.b16 %v1511, %v1510
    %1640 = vmatpush.bf16.msra.mxu0 %v1519
    %1641 = vmatpush.bf16.msra.mxu0 %v1518
    %1642 = vmatpush.bf16.msra.mxu0 %v1517
    %1643 = vmatpush.bf16.msra.mxu0 %v1516
    %1644 = vmatpush.bf16.msra.mxu0 %v1515
    %1645 = vmatpush.bf16.msra.mxu0 %v1514
    %1646 = vmatpush.bf16.msra.mxu0 %v1513
    %1647 = vmatpush.bf16.msra.mxu0 %v1512
    %1648 = vmatmul.bf16.gmra.mxu0 %v1116
    %v1649 = vpop.f32.mrf.mxu0
    %v1650 = vadd.f32 %v1254, %v1649
    %v1651 = vpop.f32.mrf.mxu0
    %1652 = vdwg.mxu0
    %1653 = vmatpush.bf16.msra.mxu0 %v1527
    %1654 = vmatpush.bf16.msra.mxu0 %v1526
    %1655 = vmatpush.bf16.msra.mxu0 %v1525
    %1656 = vmatpush.bf16.msra.mxu0 %v1524
    %1657 = vmatpush.bf16.msra.mxu0 %v1523
    %1658 = vmatpush.bf16.msra.mxu0 %v1522
    %1659 = vmatpush.bf16.msra.mxu0 %v1521
    %1660 = vmatpush.bf16.msra.mxu0 %v1520
    %1661 = vmatmul.bf16.gmra.mxu0 %v1117
    %v1662 = vpop.f32.mrf.mxu0
    %v1663 = vadd.f32 %v1650, %v1662
    %v1664 = vpop.f32.mrf.mxu0
    %1665 = vdwg.mxu0
    %1666 = vmatpush.bf16.msra.mxu0 %v1535
    %1667 = vmatpush.bf16.msra.mxu0 %v1534
    %1668 = vmatpush.bf16.msra.mxu0 %v1533
    %1669 = vmatpush.bf16.msra.mxu0 %v1532
    %1670 = vmatpush.bf16.msra.mxu0 %v1531
    %1671 = vmatpush.bf16.msra.mxu0 %v1530
    %1672 = vmatpush.bf16.msra.mxu0 %v1529
    %1673 = vmatpush.bf16.msra.mxu0 %v1528
    %1674 = vmatmul.bf16.gmra.mxu0 %v1118
    %v1675 = vpop.f32.mrf.mxu0
    %v1676 = vadd.f32 %v1663, %v1675
    %v1677 = vpop.f32.mrf.mxu0
    %1678 = vdwg.mxu0
    %1679 = vmatpush.bf16.msra.mxu0 %v1543
    %1680 = vmatpush.bf16.msra.mxu0 %v1542
    %1681 = vmatpush.bf16.msra.mxu0 %v1541
    %1682 = vmatpush.bf16.msra.mxu0 %v1540
    %1683 = vmatpush.bf16.msra.mxu0 %v1539
    %1684 = vmatpush.bf16.msra.mxu0 %v1538
    %1685 = vmatpush.bf16.msra.mxu0 %v1537
    %1686 = vmatpush.bf16.msra.mxu0 %v1536
    %1687 = vmatmul.bf16.gmra.mxu0 %v1119
    %v1688 = vpop.f32.mrf.mxu0
    %v1689 = vadd.f32 %v1676, %v1688
    %v1690 = vpop.f32.mrf.mxu0
    %1691 = vdwg.mxu0
    %1692 = vmatpush.bf16.msra.mxu0 %v1551
    %1693 = vmatpush.bf16.msra.mxu0 %v1550
    %1694 = vmatpush.bf16.msra.mxu0 %v1549
    %1695 = vmatpush.bf16.msra.mxu0 %v1548
    %1696 = vmatpush.bf16.msra.mxu0 %v1547
    %1697 = vmatpush.bf16.msra.mxu0 %v1546
    %1698 = vmatpush.bf16.msra.mxu0 %v1545
    %1699 = vmatpush.bf16.msra.mxu0 %v1544
    %1700 = vmatmul.bf16.gmra.mxu0 %v1120
    %v1701 = vpop.f32.mrf.mxu0
    %v1702 = vadd.f32 %v1689, %v1701
    %v1703 = vpop.f32.mrf.mxu0
    %1704 = vdwg.mxu0
    %1705 = vmatpush.bf16.msra.mxu0 %v1559
    %1706 = vmatpush.bf16.msra.mxu0 %v1558
    %1707 = vmatpush.bf16.msra.mxu0 %v1557
    %1708 = vmatpush.bf16.msra.mxu0 %v1556
    %1709 = vmatpush.bf16.msra.mxu0 %v1555
    %1710 = vmatpush.bf16.msra.mxu0 %v1554
    %1711 = vmatpush.bf16.msra.mxu0 %v1553
    %1712 = vmatpush.bf16.msra.mxu0 %v1552
    %1713 = vmatmul.bf16.gmra.mxu0 %v1121
    %v1714 = vpop.f32.mrf.mxu0
    %v1715 = vadd.f32 %v1702, %v1714
    %v1716 = vpop.f32.mrf.mxu0
    %1717 = vdwg.mxu0
    %1718 = vmatpush.bf16.msra.mxu0 %v1567
    %1719 = vmatpush.bf16.msra.mxu0 %v1566
    %1720 = vmatpush.bf16.msra.mxu0 %v1565
    %1721 = vmatpush.bf16.msra.mxu0 %v1564
    %1722 = vmatpush.bf16.msra.mxu0 %v1563
    %1723 = vmatpush.bf16.msra.mxu0 %v1562
    %1724 = vmatpush.bf16.msra.mxu0 %v1561
    %1725 = vmatpush.bf16.msra.mxu0 %v1560
    %1726 = vmatmul.bf16.gmra.mxu0 %v1122
    %v1727 = vpop.f32.mrf.mxu0
    %v1728 = vadd.f32 %v1715, %v1727
    %v1729 = vpop.f32.mrf.mxu0
    %1730 = vdwg.mxu0
    %1731 = vmatpush.bf16.msra.mxu0 %v1575
    %1732 = vmatpush.bf16.msra.mxu0 %v1574
    %1733 = vmatpush.bf16.msra.mxu0 %v1573
    %1734 = vmatpush.bf16.msra.mxu0 %v1572
    %1735 = vmatpush.bf16.msra.mxu0 %v1571
    %1736 = vmatpush.bf16.msra.mxu0 %v1570
    %1737 = vmatpush.bf16.msra.mxu0 %v1569
    %1738 = vmatpush.bf16.msra.mxu0 %v1568
    %1739 = vmatmul.bf16.gmra.mxu0 %v1123
    %v1740 = vpop.f32.mrf.mxu0
    %v1741 = vadd.f32 %v1728, %v1740
    %v1742 = vpop.f32.mrf.mxu0
    %1743 = vdwg.mxu0
    %v1744 = vmax.f32 %v1741, 0.0
    %v1745 = vld [vmem:[%s6] sm:$0xff]
    %v1746 = vld [vmem:[%s6 + $0x8] sm:$0xff]
    %v1747 = vld [vmem:[%s6 + $0x10] sm:$0xff]
    %v1748 = vld [vmem:[%s6 + $0x18] sm:$0xff]
    %v1749 = vld [vmem:[%s6 + $0x20] sm:$0xff]
    %v1750 = vld [vmem:[%s6 + $0x28] sm:$0xff]
    %v1751 = vld [vmem:[%s6 + $0x30] sm:$0xff]
    %v1752 = vld [vmem:[%s6 + $0x38] sm:$0xff]
    %v1753 = vld [vmem:[%s6 + $0x40] sm:$0xff]
    %v1754 = vld [vmem:[%s6 + $0x48] sm:$0xff]
    %v1755 = vld [vmem:[%s6 + $0x50] sm:$0xff]
    %v1756 = vld [vmem:[%s6 + $0x58] sm:$0xff]
    %v1757 = vld [vmem:[%s6 + $0x60] sm:$0xff]
    %v1758 = vld [vmem:[%s6 + $0x68] sm:$0xff]
    %v1759 = vld [vmem:[%s6 + $0x70] sm:$0xff]
    %v1760 = vld [vmem:[%s6 + $0x78] sm:$0xff]
    %v1761 = vld [vmem:[%s7] sm:$0x1]
    %v1763 = vperm.slane %v1761, 0
    %1765 = vmatpush.msra.mxu0 %v1760
    %1766 = vmatpush.msra.mxu0 %v1759
    %1767 = vmatpush.msra.mxu0 %v1758
    %1768 = vmatpush.msra.mxu0 %v1757
    %1769 = vmatpush.msra.mxu0 %v1756
    %1770 = vmatpush.msra.mxu0 %v1755
    %1771 = vmatpush.msra.mxu0 %v1754
    %1772 = vmatpush.msra.mxu0 %v1753
    %1773 = vmatpush.msra.mxu0 %v1752
    %1774 = vmatpush.msra.mxu0 %v1751
    %1775 = vmatpush.msra.mxu0 %v1750
    %1776 = vmatpush.msra.mxu0 %v1749
    %1777 = vmatpush.msra.mxu0 %v1748
    %1778 = vmatpush.msra.mxu0 %v1747
    %1779 = vmatpush.msra.mxu0 %v1746
    %1780 = vmatpush.msra.mxu0 %v1745
    %1781 = vmatmul.f32.gmra.mxu0 %v1744
    %v1782 = vpop.f32.mrf.mxu0
    %v1783 = vadd.f32 %v1763, %v1782
    %1784 = vdwg.mxu0
    %vm1785 = vcmask 74752
    %1786 = vst.msk [vmem:[#allocation2] sm:$0x3] %vm1785, %v1783
    // Predicated region
    $region34: #{aap_cls2_forward.3} parent=1 // pred_check
      _
    $region35: #{aap_cls2_forward.3} parent=1 // pred_check_branch
      %1788 = sbr.rel (0) target = $region37
    $region36: #{aap_cls2_forward.3} parent=1 // pred_region
      %1790 = vsyncadd [#allocation3], 0
      %s1792 = sshll.u32 [#allocation2], 4
      %s1793 = int_to_ptr.vmem [resolvable:$true] %s1792
      %s1794 = sshll.u32 %s8, 4
      %s1795 = int_to_ptr.hbm [resolvable:$true] %s1794
      %1797 = dma.vmem_to_hbm [thread:$0]  %s1793, 32, %s1795, [#allocation3]
    $region37: #{aap_cls2_forward.3} parent=1 // pred_fallthru
      _
    // Predicated region
    $region38: #{aap_cls2_forward.3} parent=1 // pred_check
      _
    $region39: #{aap_cls2_forward.3} parent=1 // pred_check_branch
      %1799 = sbr.rel (0) target = $region41
    $region40: #{aap_cls2_forward.3} parent=1 // pred_region
      %1801 = dma.done [#allocation3], 32
    $region41: #{aap_cls2_forward.3} parent=1 // pred_fallthru
      _
    %1802 = vsyncpa [#allocation3], 1

</llo_original>
